<compile_context>
chip_gen: v7x
topology: tpu7x:2x2x1
jax: 0.10.0
libtpu: 0.0.40
codegen_flags: <defaults>
</compile_context>

<pallas_src>
import functools

import jax
import jax.numpy as jnp
import numpy as np
from jax import lax
from jax.experimental import pallas as pl
from jax.experimental.pallas import tpu as pltpu


# ---------------------------------------------------------------------------
# Helpers
# ---------------------------------------------------------------------------
def _layer_norm(x, gamma, beta, eps=1e-5):
    # PyTorch nn.LayerNorm: biased variance over the last dim, f32 math.
    mean = jnp.mean(x, axis=-1, keepdims=True)
    var = jnp.mean(jnp.square(x - mean), axis=-1, keepdims=True)
    inv = lax.rsqrt(var + eps)
    return (x - mean) * inv * gamma + beta


# ---------------------------------------------------------------------------
# Pallas kernel: one (batch, query-tile) block of the encoder layer per step.
# ---------------------------------------------------------------------------
def encoder_layer_kernel(
    num_heads,
    xq_ref, xkv_ref,
    wq_ref, bq_ref, wk_ref, bk_ref, wv_ref, bv_ref, wo_ref, bo_ref,
    w1_ref, b1_ref, w2_ref, b2_ref,
    ln1_g_ref, ln1_b_ref, ln2_g_ref, ln2_b_ref,
    o_ref,
):
    f32 = jnp.float32
    bf16 = jnp.bfloat16

    xq = xq_ref[0]                      # [Tq, D]  f32 (query rows + residual)
    xkv = xkv_ref[0]                    # [S,  D]  f32 (full sequence for K/V)
    Tq, D = xq.shape
    S = xkv.shape[0]
    dk = D // num_heads
    scale = dk ** -0.5                  # folded into q once (static)

    xq_b = xq.astype(bf16)
    xkv_b = xkv.astype(bf16)

    # ---- QKV projections (bf16 operands, f32 accumulation) ----------------
    q = jnp.dot(xq_b, wq_ref[...], preferred_element_type=f32) + bq_ref[0]   # [Tq, D]
    k = jnp.dot(xkv_b, wk_ref[...], preferred_element_type=f32) + bk_ref[0]  # [S,  D]
    v = jnp.dot(xkv_b, wv_ref[...], preferred_element_type=f32) + bv_ref[0]  # [S,  D]

    q_b = (q * scale).astype(bf16)
    k_b = k.astype(bf16)
    v_b = v.astype(bf16)

    # ---- Per-head attention, folded straight into the output projection ----
    # concat_h(ctx_h) @ W_o  ==  sum_h ctx_h @ W_o[h*dk:(h+1)*dk, :]
    # Static unroll over heads; only the accumulator stays live across heads.
    attn_acc = jnp.zeros((Tq, D), f32)
    contract_last = (((1,), (1,)), ((), ()))   # contract dk of lhs with dk of rhs
    for h in range(num_heads):
        sl = slice(h * dk, (h + 1) * dk)
        qh = q_b[:, sl]                                        # [Tq, dk]
        kh = k_b[:, sl]                                        # [S,  dk]
        vh = v_b[:, sl]                                        # [S,  dk]

        # scores = qh @ kh^T without materializing a transpose
        s = lax.dot_general(qh, kh, contract_last,
                            preferred_element_type=f32)        # [Tq, S] f32
        s = s - jnp.max(s, axis=-1, keepdims=True)
        p = jnp.exp(s)
        p = p * pl.reciprocal(jnp.sum(p, axis=-1, keepdims=True), approx=True)

        ctx = jnp.dot(p.astype(bf16), vh,
                      preferred_element_type=f32)              # [Tq, dk] f32
        attn_acc = attn_acc + jnp.dot(ctx.astype(bf16), wo_ref[sl, :],
                                      preferred_element_type=f32)

    attn = attn_acc + bo_ref[0]                                # [Tq, D] f32

    # ---- Residual + LayerNorm 1 (f32) --------------------------------------
    x1 = _layer_norm(xq + attn, ln1_g_ref[0], ln1_b_ref[0])

    # ---- Feed-forward: Linear -> ReLU -> Linear (bf16 matmuls, f32 acc) -----
    h1 = jnp.dot(x1.astype(bf16), w1_ref[...],
                 preferred_element_type=f32) + b1_ref[0]       # [Tq, F]
    h1 = jnp.maximum(h1, 0.0)
    ff = jnp.dot(h1.astype(bf16), w2_ref[...],
                 preferred_element_type=f32) + b2_ref[0]       # [Tq, D]

    # ---- Residual + LayerNorm 2 (f32) --------------------------------------
    out = _layer_norm(x1 + ff, ln2_g_ref[0], ln2_b_ref[0])
    o_ref[0] = out.astype(o_ref.dtype)


# ---------------------------------------------------------------------------
# Wrapper
# ---------------------------------------------------------------------------
def encoder_layer(x, params, num_heads, tile_s=128):
    B, S, D = x.shape
    F = params["w1"].shape[1]
    assert D % num_heads == 0

    # Query-row tile.  TODO(synk): pad S instead of falling back when S is not
    # a multiple of the tile size.
    tile_s = min(tile_s, S)
    if S % tile_s != 0:
        tile_s = S
    n_q = S // tile_s

    # Weights to bf16 (halves weight HBM/VMEM traffic, full-rate MXU).
    bf16 = jnp.bfloat16
    wq = params["wq"].astype(bf16)
    wk = params["wk"].astype(bf16)
    wv = params["wv"].astype(bf16)
    wo = params["wo"].astype(bf16)
    w1 = params["w1"].astype(bf16)
    w2 = params["w2"].astype(bf16)

    def full2d(shape):
        return pl.BlockSpec(shape, lambda b, q: (0, 0))

    in_specs = [
        pl.BlockSpec((1, tile_s, D), lambda b, q: (b, q, 0)),   # x (query tile)
        pl.BlockSpec((1, S, D), lambda b, q: (b, 0, 0)),        # x (full, for K/V)
        full2d((D, D)), full2d((1, D)),                         # wq, bq
        full2d((D, D)), full2d((1, D)),                         # wk, bk
        full2d((D, D)), full2d((1, D)),                         # wv, bv
        full2d((D, D)), full2d((1, D)),                         # wo, bo
        full2d((D, F)), full2d((1, F)),                         # w1, b1
        full2d((F, D)), full2d((1, D)),                         # w2, b2
        full2d((1, D)), full2d((1, D)),                         # ln1 gamma, beta
        full2d((1, D)), full2d((1, D)),                         # ln2 gamma, beta
    ]
    out_specs = pl.BlockSpec((1, tile_s, D), lambda b, q: (b, q, 0))

    # Explicit VMEM budget: resident weights/biases + double-buffered activation
    # blocks + rough f32 intermediates, clamped to the v7x 64 MiB ceiling.
    def _nbytes(a):
        return a.size * a.dtype.itemsize

    weight_bytes = sum(_nbytes(a) for a in (wq, wk, wv, wo, w1, w2))
    small_bytes = sum(_nbytes(params[k]) for k in
                      ("bq", "bk", "bv", "bo", "b1", "b2",
                       "ln1_g", "ln1_b", "ln2_g", "ln2_b"))
    block_io = 4 * (2 * tile_s * D + S * D)                     # x_q, out, x_kv
    work = 4 * (3 * S * D + tile_s * max(F, S) + 4 * tile_s * D)
    vmem_limit = int(min(64 << 20,
                         max(16 << 20,
                             2 * (weight_bytes + small_bytes + block_io) + work)))

    kernel = functools.partial(encoder_layer_kernel, num_heads)
    return pl.pallas_call(
        kernel,
        out_shape=jax.ShapeDtypeStruct((B, S, D), x.dtype),
        grid_spec=pltpu.PrefetchScalarGridSpec(
            num_scalar_prefetch=0,
            grid=(B, n_q),
            in_specs=in_specs,
            out_specs=out_specs,
        ),
        compiler_params=pltpu.CompilerParams(
            dimension_semantics=("parallel", "parallel"),
            vmem_limit_bytes=vmem_limit,
        ),
    )(
        x, x,
        wq, params["bq"], wk, params["bk"],
        wv, params["bv"], wo, params["bo"],
        w1, params["b1"], w2, params["b2"],
        params["ln1_g"], params["ln1_b"], params["ln2_g"], params["ln2_b"],
    )


# ---------------------------------------------------------------------------
# Pure-JAX f32 reference (same math) for a correctness check.
# ---------------------------------------------------------------------------
def encoder_layer_ref(x, p, num_heads):
    B, S, D = x.shape
    dk = D // num_heads

    def ln(y, g, b, eps=1e-5):
        m = jnp.mean(y, -1, keepdims=True)
        v = jnp.mean(jnp.square(y - m), -1, keepdims=True)
        return (y - m) * lax.rsqrt(v + eps) * g + b

    q = x @ p["wq"] + p["bq"][0]
    k = x @ p["wk"] + p["bk"][0]
    v = x @ p["wv"] + p["bv"][0]
    q = q.reshape(B, S, num_heads, dk).transpose(0, 2, 1, 3)
    k = k.reshape(B, S, num_heads, dk).transpose(0, 2, 1, 3)
    v = v.reshape(B, S, num_heads, dk).transpose(0, 2, 1, 3)
    s = jnp.einsum("bhqd,bhkd->bhqk", q, k) / jnp.sqrt(jnp.float32(dk))
    a = jax.nn.softmax(s, axis=-1)
    o = jnp.einsum("bhqk,bhkd->bhqd", a, v).transpose(0, 2, 1, 3).reshape(B, S, D)
    o = o @ p["wo"] + p["bo"][0]
    x1 = ln(x + o, p["ln1_g"][0], p["ln1_b"][0])
    h = jnp.maximum(x1 @ p["w1"] + p["b1"][0], 0.0)
    ff = h @ p["w2"] + p["b2"][0]
    return ln(x1 + ff, p["ln2_g"][0], p["ln2_b"][0])


# ---------------------------------------------------------------------------
if __name__ == "__main__":
    d_model, num_heads, d_ff = 32, 4, 64
    B, S = 2, 8

    key = jax.random.PRNGKey(0)
    keys = jax.random.split(key, 16)

    def init_w(k, shape, scale=0.05):
        return jax.random.normal(k, shape, jnp.float32) * scale

    params = {
        "wq": init_w(keys[0], (d_model, d_model)),
        "bq": init_w(keys[1], (1, d_model)),
        "wk": init_w(keys[2], (d_model, d_model)),
        "bk": init_w(keys[3], (1, d_model)),
        "wv": init_w(keys[4], (d_model, d_model)),
        "bv": init_w(keys[5], (1, d_model)),
        "wo": init_w(keys[6], (d_model, d_model)),
        "bo": init_w(keys[7], (1, d_model)),
        "w1": init_w(keys[8], (d_model, d_ff)),
        "b1": init_w(keys[9], (1, d_ff)),
        "w2": init_w(keys[10], (d_ff, d_model)),
        "b2": init_w(keys[11], (1, d_model)),
        "ln1_g": jnp.ones((1, d_model), jnp.float32),
        "ln1_b": jnp.zeros((1, d_model), jnp.float32),
        "ln2_g": jnp.ones((1, d_model), jnp.float32),
        "ln2_b": jnp.zeros((1, d_model), jnp.float32),
    }

    x = jax.random.normal(keys[12], (B, S, d_model), jnp.float32)

    out = encoder_layer(x, params, num_heads)
    out = jax.block_until_ready(out)

    ref = encoder_layer_ref(x, params, num_heads)
    # bf16 MXU operands with f32 accumulation vs. the all-f32 reference.
    np.testing.assert_allclose(np.asarray(out), np.asarray(ref),
                               rtol=2e-2, atol=2e-2)
    print("KERNEL_OK")
</pallas_src>

<mosaic_0001>
module attributes {stable_mosaic.version = 11 : i64} {
  func.func @encoder_layer_kernel(%arg0: i32, %arg1: i32, %arg2: memref<1x8x32xf32, #tpu.memory_space<vmem>>, %arg3: memref<1x8x32xf32, #tpu.memory_space<vmem>>, %arg4: memref<32x32xbf16, #tpu.memory_space<vmem>>, %arg5: memref<1x32xf32, #tpu.memory_space<vmem>>, %arg6: memref<32x32xbf16, #tpu.memory_space<vmem>>, %arg7: memref<1x32xf32, #tpu.memory_space<vmem>>, %arg8: memref<32x32xbf16, #tpu.memory_space<vmem>>, %arg9: memref<1x32xf32, #tpu.memory_space<vmem>>, %arg10: memref<32x32xbf16, #tpu.memory_space<vmem>>, %arg11: memref<1x32xf32, #tpu.memory_space<vmem>>, %arg12: memref<32x64xbf16, #tpu.memory_space<vmem>>, %arg13: memref<1x64xf32, #tpu.memory_space<vmem>>, %arg14: memref<64x32xbf16, #tpu.memory_space<vmem>>, %arg15: memref<1x32xf32, #tpu.memory_space<vmem>>, %arg16: memref<1x32xf32, #tpu.memory_space<vmem>>, %arg17: memref<1x32xf32, #tpu.memory_space<vmem>>, %arg18: memref<1x32xf32, #tpu.memory_space<vmem>>, %arg19: memref<1x32xf32, #tpu.memory_space<vmem>>, %arg20: memref<1x8x32xf32, #tpu.memory_space<vmem>>) attributes {dimension_semantics = [#tpu.dimension_semantics<parallel>, #tpu.dimension_semantics<parallel>], iteration_bounds = array<i64: 2, 1>, scalar_prefetch = 0 : i64, scratch_operands = 0 : i64, tpu.core_type = #tpu.core_type<tc>, window_params = [{transform_indices = @transform_0, window_bounds = array<i64: 1, 8, 32>}, {transform_indices = @transform_1, window_bounds = array<i64: 1, 8, 32>}, {pipeline_mode = #tpu.pipeline_mode<synchronous>, transform_indices = @transform_2, window_bounds = array<i64: 32, 32>}, {pipeline_mode = #tpu.pipeline_mode<synchronous>, transform_indices = @transform_3, window_bounds = array<i64: 1, 32>}, {pipeline_mode = #tpu.pipeline_mode<synchronous>, transform_indices = @transform_4, window_bounds = array<i64: 32, 32>}, {pipeline_mode = #tpu.pipeline_mode<synchronous>, transform_indices = @transform_5, window_bounds = array<i64: 1, 32>}, {pipeline_mode = #tpu.pipeline_mode<synchronous>, transform_indices = @transform_6, window_bounds = array<i64: 32, 32>}, {pipeline_mode = #tpu.pipeline_mode<synchronous>, transform_indices = @transform_7, window_bounds = array<i64: 1, 32>}, {pipeline_mode = #tpu.pipeline_mode<synchronous>, transform_indices = @transform_8, window_bounds = array<i64: 32, 32>}, {pipeline_mode = #tpu.pipeline_mode<synchronous>, transform_indices = @transform_9, window_bounds = array<i64: 1, 32>}, {pipeline_mode = #tpu.pipeline_mode<synchronous>, transform_indices = @transform_10, window_bounds = array<i64: 32, 64>}, {pipeline_mode = #tpu.pipeline_mode<synchronous>, transform_indices = @transform_11, window_bounds = array<i64: 1, 64>}, {pipeline_mode = #tpu.pipeline_mode<synchronous>, transform_indices = @transform_12, window_bounds = array<i64: 64, 32>}, {pipeline_mode = #tpu.pipeline_mode<synchronous>, transform_indices = @transform_13, window_bounds = array<i64: 1, 32>}, {pipeline_mode = #tpu.pipeline_mode<synchronous>, transform_indices = @transform_14, window_bounds = array<i64: 1, 32>}, {pipeline_mode = #tpu.pipeline_mode<synchronous>, transform_indices = @transform_15, window_bounds = array<i64: 1, 32>}, {pipeline_mode = #tpu.pipeline_mode<synchronous>, transform_indices = @transform_16, window_bounds = array<i64: 1, 32>}, {pipeline_mode = #tpu.pipeline_mode<synchronous>, transform_indices = @transform_17, window_bounds = array<i64: 1, 32>}, {transform_indices = @transform_18, window_bounds = array<i64: 1, 8, 32>}]} {
    %c0 = arith.constant 0 : index
    %c0_0 = arith.constant 0 : index
    %c0_1 = arith.constant 0 : index
    %0 = vector.load %arg2[%c0, %c0_0, %c0_1] : memref<1x8x32xf32, #tpu.memory_space<vmem>>, vector<1x8x32xf32>
    %1 = vector.shape_cast %0 : vector<1x8x32xf32> to vector<8x32xf32>
    %c0_2 = arith.constant 0 : index
    %c0_3 = arith.constant 0 : index
    %c0_4 = arith.constant 0 : index
    %2 = vector.load %arg3[%c0_2, %c0_3, %c0_4] : memref<1x8x32xf32, #tpu.memory_space<vmem>>, vector<1x8x32xf32>
    %3 = vector.shape_cast %2 : vector<1x8x32xf32> to vector<8x32xf32>
    %4 = arith.truncf %1 : vector<8x32xf32> to vector<8x32xbf16>
    %5 = arith.truncf %3 : vector<8x32xf32> to vector<8x32xbf16>
    %c0_5 = arith.constant 0 : index
    %c0_6 = arith.constant 0 : index
    %6 = vector.load %arg4[%c0_5, %c0_6] : memref<32x32xbf16, #tpu.memory_space<vmem>>, vector<32x32xbf16>
    %cst = arith.constant dense<0.000000e+00> : vector<8x32xf32>
    %7 = tpu.matmul %4, %6, %cst {dimension_numbers = #tpu.dot_dimension_numbers<[1], [0], [0], [1], [0, 0, 1, 1], [], []>} : vector<8x32xbf16>, vector<32x32xbf16>, vector<8x32xf32> -> vector<8x32xf32>
    %c0_7 = arith.constant 0 : index
    %c0_8 = arith.constant 0 : index
    %8 = vector.load %arg5[%c0_7, %c0_8] : memref<1x32xf32, #tpu.memory_space<vmem>>, vector<1x32xf32>
    %9 = vector.shape_cast %8 : vector<1x32xf32> to vector<32xf32>
    %10 = vector.shape_cast %9 : vector<32xf32> to vector<1x32xf32>
    %11 = vector.broadcast %10 : vector<1x32xf32> to vector<8x32xf32>
    %12 = arith.addf %7, %11 : vector<8x32xf32>
    %c0_9 = arith.constant 0 : index
    %c0_10 = arith.constant 0 : index
    %13 = vector.load %arg6[%c0_9, %c0_10] : memref<32x32xbf16, #tpu.memory_space<vmem>>, vector<32x32xbf16>
    %cst_11 = arith.constant dense<0.000000e+00> : vector<8x32xf32>
    %14 = tpu.matmul %5, %13, %cst_11 {dimension_numbers = #tpu.dot_dimension_numbers<[1], [0], [0], [1], [0, 0, 1, 1], [], []>} : vector<8x32xbf16>, vector<32x32xbf16>, vector<8x32xf32> -> vector<8x32xf32>
    %c0_12 = arith.constant 0 : index
    %c0_13 = arith.constant 0 : index
    %15 = vector.load %arg7[%c0_12, %c0_13] : memref<1x32xf32, #tpu.memory_space<vmem>>, vector<1x32xf32>
    %16 = vector.shape_cast %15 : vector<1x32xf32> to vector<32xf32>
    %17 = vector.shape_cast %16 : vector<32xf32> to vector<1x32xf32>
    %18 = vector.broadcast %17 : vector<1x32xf32> to vector<8x32xf32>
    %19 = arith.addf %14, %18 : vector<8x32xf32>
    %c0_14 = arith.constant 0 : index
    %c0_15 = arith.constant 0 : index
    %20 = vector.load %arg8[%c0_14, %c0_15] : memref<32x32xbf16, #tpu.memory_space<vmem>>, vector<32x32xbf16>
    %cst_16 = arith.constant dense<0.000000e+00> : vector<8x32xf32>
    %21 = tpu.matmul %5, %20, %cst_16 {dimension_numbers = #tpu.dot_dimension_numbers<[1], [0], [0], [1], [0, 0, 1, 1], [], []>} : vector<8x32xbf16>, vector<32x32xbf16>, vector<8x32xf32> -> vector<8x32xf32>
    %c0_17 = arith.constant 0 : index
    %c0_18 = arith.constant 0 : index
    %22 = vector.load %arg9[%c0_17, %c0_18] : memref<1x32xf32, #tpu.memory_space<vmem>>, vector<1x32xf32>
    %23 = vector.shape_cast %22 : vector<1x32xf32> to vector<32xf32>
    %24 = vector.shape_cast %23 : vector<32xf32> to vector<1x32xf32>
    %25 = vector.broadcast %24 : vector<1x32xf32> to vector<8x32xf32>
    %26 = arith.addf %21, %25 : vector<8x32xf32>
    %cst_19 = arith.constant 0.353553385 : f32
    %27 = vector.broadcast %cst_19 : f32 to vector<8x32xf32>
    %28 = arith.mulf %12, %27 : vector<8x32xf32>
    %29 = arith.truncf %28 : vector<8x32xf32> to vector<8x32xbf16>
    %30 = arith.truncf %19 : vector<8x32xf32> to vector<8x32xbf16>
    %31 = arith.truncf %26 : vector<8x32xf32> to vector<8x32xbf16>
    %cst_20 = arith.constant 0.000000e+00 : f32
    %32 = vector.broadcast %cst_20 : f32 to vector<8x32xf32>
    %33 = vector.extract_strided_slice %29 {offsets = [0, 0], sizes = [8, 8], strides = [1, 1]} : vector<8x32xbf16> to vector<8x8xbf16>
    %34 = vector.extract_strided_slice %30 {offsets = [0, 0], sizes = [8, 8], strides = [1, 1]} : vector<8x32xbf16> to vector<8x8xbf16>
    %35 = vector.extract_strided_slice %31 {offsets = [0, 0], sizes = [8, 8], strides = [1, 1]} : vector<8x32xbf16> to vector<8x8xbf16>
    %cst_21 = arith.constant dense<0.000000e+00> : vector<8x8xf32>
    %36 = tpu.matmul %33, %34, %cst_21 {dimension_numbers = #tpu.dot_dimension_numbers<[1], [1], [0], [0], [0, 0, 1, 0], [], []>} : vector<8x8xbf16>, vector<8x8xbf16>, vector<8x8xf32> -> vector<8x8xf32>
    %cst_22 = arith.constant dense<0xFF800000> : vector<8xf32>
    %37 = vector.multi_reduction <maximumf>, %36, %cst_22 [1] : vector<8x8xf32> to vector<8xf32>
    %38 = vector.shape_cast %37 : vector<8xf32> to vector<8x1xf32>
    %39 = vector.broadcast %38 : vector<8x1xf32> to vector<8x8xf32>
    %40 = arith.subf %36, %39 : vector<8x8xf32>
    %41 = math.exp %40 : vector<8x8xf32>
    %cst_23 = arith.constant dense<0.000000e+00> : vector<8xf32>
    %42 = vector.multi_reduction <add>, %41, %cst_23 [1] : vector<8x8xf32> to vector<8xf32>
    %43 = vector.shape_cast %42 : vector<8xf32> to vector<8x1xf32>
    %44 = tpu.reciprocal %43 {approx = true} : vector<8x1xf32> -> vector<8x1xf32>
    %45 = vector.broadcast %44 : vector<8x1xf32> to vector<8x8xf32>
    %46 = arith.mulf %41, %45 : vector<8x8xf32>
    %47 = arith.truncf %46 : vector<8x8xf32> to vector<8x8xbf16>
    %cst_24 = arith.constant dense<0.000000e+00> : vector<8x8xf32>
    %48 = tpu.matmul %47, %35, %cst_24 {dimension_numbers = #tpu.dot_dimension_numbers<[1], [0], [0], [1], [0, 0, 1, 1], [], []>} : vector<8x8xbf16>, vector<8x8xbf16>, vector<8x8xf32> -> vector<8x8xf32>
    %49 = arith.truncf %48 : vector<8x8xf32> to vector<8x8xbf16>
    %c0_25 = arith.constant 0 : index
    %c0_26 = arith.constant 0 : index
    %50 = vector.load %arg10[%c0_25, %c0_26] : memref<32x32xbf16, #tpu.memory_space<vmem>>, vector<8x32xbf16>
    %cst_27 = arith.constant dense<0.000000e+00> : vector<8x32xf32>
    %51 = tpu.matmul %49, %50, %cst_27 {dimension_numbers = #tpu.dot_dimension_numbers<[1], [0], [0], [1], [0, 0, 1, 1], [], []>} : vector<8x8xbf16>, vector<8x32xbf16>, vector<8x32xf32> -> vector<8x32xf32>
    %52 = arith.addf %32, %51 : vector<8x32xf32>
    %53 = vector.extract_strided_slice %29 {offsets = [0, 8], sizes = [8, 8], strides = [1, 1]} : vector<8x32xbf16> to vector<8x8xbf16>
    %54 = vector.extract_strided_slice %30 {offsets = [0, 8], sizes = [8, 8], strides = [1, 1]} : vector<8x32xbf16> to vector<8x8xbf16>
    %55 = vector.extract_strided_slice %31 {offsets = [0, 8], sizes = [8, 8], strides = [1, 1]} : vector<8x32xbf16> to vector<8x8xbf16>
    %cst_28 = arith.constant dense<0.000000e+00> : vector<8x8xf32>
    %56 = tpu.matmul %53, %54, %cst_28 {dimension_numbers = #tpu.dot_dimension_numbers<[1], [1], [0], [0], [0, 0, 1, 0], [], []>} : vector<8x8xbf16>, vector<8x8xbf16>, vector<8x8xf32> -> vector<8x8xf32>
    %cst_29 = arith.constant dense<0xFF800000> : vector<8xf32>
    %57 = vector.multi_reduction <maximumf>, %56, %cst_29 [1] : vector<8x8xf32> to vector<8xf32>
    %58 = vector.shape_cast %57 : vector<8xf32> to vector<8x1xf32>
    %59 = vector.broadcast %58 : vector<8x1xf32> to vector<8x8xf32>
    %60 = arith.subf %56, %59 : vector<8x8xf32>
    %61 = math.exp %60 : vector<8x8xf32>
    %cst_30 = arith.constant dense<0.000000e+00> : vector<8xf32>
    %62 = vector.multi_reduction <add>, %61, %cst_30 [1] : vector<8x8xf32> to vector<8xf32>
    %63 = vector.shape_cast %62 : vector<8xf32> to vector<8x1xf32>
    %64 = tpu.reciprocal %63 {approx = true} : vector<8x1xf32> -> vector<8x1xf32>
    %65 = vector.broadcast %64 : vector<8x1xf32> to vector<8x8xf32>
    %66 = arith.mulf %61, %65 : vector<8x8xf32>
    %67 = arith.truncf %66 : vector<8x8xf32> to vector<8x8xbf16>
    %cst_31 = arith.constant dense<0.000000e+00> : vector<8x8xf32>
    %68 = tpu.matmul %67, %55, %cst_31 {dimension_numbers = #tpu.dot_dimension_numbers<[1], [0], [0], [1], [0, 0, 1, 1], [], []>} : vector<8x8xbf16>, vector<8x8xbf16>, vector<8x8xf32> -> vector<8x8xf32>
    %69 = arith.truncf %68 : vector<8x8xf32> to vector<8x8xbf16>
    %c8 = arith.constant 8 : index
    %c0_32 = arith.constant 0 : index
    %70 = vector.load %arg10[%c8, %c0_32] : memref<32x32xbf16, #tpu.memory_space<vmem>>, vector<8x32xbf16>
    %cst_33 = arith.constant dense<0.000000e+00> : vector<8x32xf32>
    %71 = tpu.matmul %69, %70, %cst_33 {dimension_numbers = #tpu.dot_dimension_numbers<[1], [0], [0], [1], [0, 0, 1, 1], [], []>} : vector<8x8xbf16>, vector<8x32xbf16>, vector<8x32xf32> -> vector<8x32xf32>
    %72 = arith.addf %52, %71 : vector<8x32xf32>
    %73 = vector.extract_strided_slice %29 {offsets = [0, 16], sizes = [8, 8], strides = [1, 1]} : vector<8x32xbf16> to vector<8x8xbf16>
    %74 = vector.extract_strided_slice %30 {offsets = [0, 16], sizes = [8, 8], strides = [1, 1]} : vector<8x32xbf16> to vector<8x8xbf16>
    %75 = vector.extract_strided_slice %31 {offsets = [0, 16], sizes = [8, 8], strides = [1, 1]} : vector<8x32xbf16> to vector<8x8xbf16>
    %cst_34 = arith.constant dense<0.000000e+00> : vector<8x8xf32>
    %76 = tpu.matmul %73, %74, %cst_34 {dimension_numbers = #tpu.dot_dimension_numbers<[1], [1], [0], [0], [0, 0, 1, 0], [], []>} : vector<8x8xbf16>, vector<8x8xbf16>, vector<8x8xf32> -> vector<8x8xf32>
    %cst_35 = arith.constant dense<0xFF800000> : vector<8xf32>
    %77 = vector.multi_reduction <maximumf>, %76, %cst_35 [1] : vector<8x8xf32> to vector<8xf32>
    %78 = vector.shape_cast %77 : vector<8xf32> to vector<8x1xf32>
    %79 = vector.broadcast %78 : vector<8x1xf32> to vector<8x8xf32>
    %80 = arith.subf %76, %79 : vector<8x8xf32>
    %81 = math.exp %80 : vector<8x8xf32>
    %cst_36 = arith.constant dense<0.000000e+00> : vector<8xf32>
    %82 = vector.multi_reduction <add>, %81, %cst_36 [1] : vector<8x8xf32> to vector<8xf32>
    %83 = vector.shape_cast %82 : vector<8xf32> to vector<8x1xf32>
    %84 = tpu.reciprocal %83 {approx = true} : vector<8x1xf32> -> vector<8x1xf32>
    %85 = vector.broadcast %84 : vector<8x1xf32> to vector<8x8xf32>
    %86 = arith.mulf %81, %85 : vector<8x8xf32>
    %87 = arith.truncf %86 : vector<8x8xf32> to vector<8x8xbf16>
    %cst_37 = arith.constant dense<0.000000e+00> : vector<8x8xf32>
    %88 = tpu.matmul %87, %75, %cst_37 {dimension_numbers = #tpu.dot_dimension_numbers<[1], [0], [0], [1], [0, 0, 1, 1], [], []>} : vector<8x8xbf16>, vector<8x8xbf16>, vector<8x8xf32> -> vector<8x8xf32>
    %89 = arith.truncf %88 : vector<8x8xf32> to vector<8x8xbf16>
    %c16 = arith.constant 16 : index
    %c0_38 = arith.constant 0 : index
    %90 = vector.load %arg10[%c16, %c0_38] : memref<32x32xbf16, #tpu.memory_space<vmem>>, vector<8x32xbf16>
    %cst_39 = arith.constant dense<0.000000e+00> : vector<8x32xf32>
    %91 = tpu.matmul %89, %90, %cst_39 {dimension_numbers = #tpu.dot_dimension_numbers<[1], [0], [0], [1], [0, 0, 1, 1], [], []>} : vector<8x8xbf16>, vector<8x32xbf16>, vector<8x32xf32> -> vector<8x32xf32>
    %92 = arith.addf %72, %91 : vector<8x32xf32>
    %93 = vector.extract_strided_slice %29 {offsets = [0, 24], sizes = [8, 8], strides = [1, 1]} : vector<8x32xbf16> to vector<8x8xbf16>
    %94 = vector.extract_strided_slice %30 {offsets = [0, 24], sizes = [8, 8], strides = [1, 1]} : vector<8x32xbf16> to vector<8x8xbf16>
    %95 = vector.extract_strided_slice %31 {offsets = [0, 24], sizes = [8, 8], strides = [1, 1]} : vector<8x32xbf16> to vector<8x8xbf16>
    %cst_40 = arith.constant dense<0.000000e+00> : vector<8x8xf32>
    %96 = tpu.matmul %93, %94, %cst_40 {dimension_numbers = #tpu.dot_dimension_numbers<[1], [1], [0], [0], [0, 0, 1, 0], [], []>} : vector<8x8xbf16>, vector<8x8xbf16>, vector<8x8xf32> -> vector<8x8xf32>
    %cst_41 = arith.constant dense<0xFF800000> : vector<8xf32>
    %97 = vector.multi_reduction <maximumf>, %96, %cst_41 [1] : vector<8x8xf32> to vector<8xf32>
    %98 = vector.shape_cast %97 : vector<8xf32> to vector<8x1xf32>
    %99 = vector.broadcast %98 : vector<8x1xf32> to vector<8x8xf32>
    %100 = arith.subf %96, %99 : vector<8x8xf32>
    %101 = math.exp %100 : vector<8x8xf32>
    %cst_42 = arith.constant dense<0.000000e+00> : vector<8xf32>
    %102 = vector.multi_reduction <add>, %101, %cst_42 [1] : vector<8x8xf32> to vector<8xf32>
    %103 = vector.shape_cast %102 : vector<8xf32> to vector<8x1xf32>
    %104 = tpu.reciprocal %103 {approx = true} : vector<8x1xf32> -> vector<8x1xf32>
    %105 = vector.broadcast %104 : vector<8x1xf32> to vector<8x8xf32>
    %106 = arith.mulf %101, %105 : vector<8x8xf32>
    %107 = arith.truncf %106 : vector<8x8xf32> to vector<8x8xbf16>
    %cst_43 = arith.constant dense<0.000000e+00> : vector<8x8xf32>
    %108 = tpu.matmul %107, %95, %cst_43 {dimension_numbers = #tpu.dot_dimension_numbers<[1], [0], [0], [1], [0, 0, 1, 1], [], []>} : vector<8x8xbf16>, vector<8x8xbf16>, vector<8x8xf32> -> vector<8x8xf32>
    %109 = arith.truncf %108 : vector<8x8xf32> to vector<8x8xbf16>
    %c24 = arith.constant 24 : index
    %c0_44 = arith.constant 0 : index
    %110 = vector.load %arg10[%c24, %c0_44] : memref<32x32xbf16, #tpu.memory_space<vmem>>, vector<8x32xbf16>
    %cst_45 = arith.constant dense<0.000000e+00> : vector<8x32xf32>
    %111 = tpu.matmul %109, %110, %cst_45 {dimension_numbers = #tpu.dot_dimension_numbers<[1], [0], [0], [1], [0, 0, 1, 1], [], []>} : vector<8x8xbf16>, vector<8x32xbf16>, vector<8x32xf32> -> vector<8x32xf32>
    %112 = arith.addf %92, %111 : vector<8x32xf32>
    %c0_46 = arith.constant 0 : index
    %c0_47 = arith.constant 0 : index
    %113 = vector.load %arg11[%c0_46, %c0_47] : memref<1x32xf32, #tpu.memory_space<vmem>>, vector<1x32xf32>
    %114 = vector.shape_cast %113 : vector<1x32xf32> to vector<32xf32>
    %115 = vector.shape_cast %114 : vector<32xf32> to vector<1x32xf32>
    %116 = vector.broadcast %115 : vector<1x32xf32> to vector<8x32xf32>
    %117 = arith.addf %112, %116 : vector<8x32xf32>
    %118 = arith.addf %1, %117 : vector<8x32xf32>
    %c0_48 = arith.constant 0 : index
    %c0_49 = arith.constant 0 : index
    %119 = vector.load %arg16[%c0_48, %c0_49] : memref<1x32xf32, #tpu.memory_space<vmem>>, vector<1x32xf32>
    %120 = vector.shape_cast %119 : vector<1x32xf32> to vector<32xf32>
    %c0_50 = arith.constant 0 : index
    %c0_51 = arith.constant 0 : index
    %121 = vector.load %arg17[%c0_50, %c0_51] : memref<1x32xf32, #tpu.memory_space<vmem>>, vector<1x32xf32>
    %122 = vector.shape_cast %121 : vector<1x32xf32> to vector<32xf32>
    %cst_52 = arith.constant dense<0.000000e+00> : vector<8xf32>
    %123 = vector.multi_reduction <add>, %118, %cst_52 [1] : vector<8x32xf32> to vector<8xf32>
    %124 = vector.shape_cast %123 : vector<8xf32> to vector<8x1xf32>
    %cst_53 = arith.constant 3.200000e+01 : f32
    %125 = vector.broadcast %cst_53 : f32 to vector<8x1xf32>
    %126 = arith.divf %124, %125 : vector<8x1xf32>
    %127 = vector.broadcast %126 : vector<8x1xf32> to vector<8x32xf32>
    %128 = arith.subf %118, %127 : vector<8x32xf32>
    %129 = arith.mulf %128, %128 : vector<8x32xf32>
    %cst_54 = arith.constant dense<0.000000e+00> : vector<8xf32>
    %130 = vector.multi_reduction <add>, %129, %cst_54 [1] : vector<8x32xf32> to vector<8xf32>
    %131 = vector.shape_cast %130 : vector<8xf32> to vector<8x1xf32>
    %cst_55 = arith.constant 3.200000e+01 : f32
    %132 = vector.broadcast %cst_55 : f32 to vector<8x1xf32>
    %133 = arith.divf %131, %132 : vector<8x1xf32>
    %cst_56 = arith.constant 9.99999974E-6 : f32
    %134 = vector.broadcast %cst_56 : f32 to vector<8x1xf32>
    %135 = arith.addf %133, %134 : vector<8x1xf32>
    %136 = math.rsqrt %135 : vector<8x1xf32>
    %137 = vector.broadcast %126 : vector<8x1xf32> to vector<8x32xf32>
    %138 = arith.subf %118, %137 : vector<8x32xf32>
    %139 = vector.broadcast %136 : vector<8x1xf32> to vector<8x32xf32>
    %140 = arith.mulf %138, %139 : vector<8x32xf32>
    %141 = vector.shape_cast %120 : vector<32xf32> to vector<1x32xf32>
    %142 = vector.broadcast %141 : vector<1x32xf32> to vector<8x32xf32>
    %143 = arith.mulf %140, %142 : vector<8x32xf32>
    %144 = vector.shape_cast %122 : vector<32xf32> to vector<1x32xf32>
    %145 = vector.broadcast %144 : vector<1x32xf32> to vector<8x32xf32>
    %146 = arith.addf %143, %145 : vector<8x32xf32>
    %147 = arith.truncf %146 : vector<8x32xf32> to vector<8x32xbf16>
    %c0_57 = arith.constant 0 : index
    %c0_58 = arith.constant 0 : index
    %148 = vector.load %arg12[%c0_57, %c0_58] : memref<32x64xbf16, #tpu.memory_space<vmem>>, vector<32x64xbf16>
    %cst_59 = arith.constant dense<0.000000e+00> : vector<8x64xf32>
    %149 = tpu.matmul %147, %148, %cst_59 {dimension_numbers = #tpu.dot_dimension_numbers<[1], [0], [0], [1], [0, 0, 1, 1], [], []>} : vector<8x32xbf16>, vector<32x64xbf16>, vector<8x64xf32> -> vector<8x64xf32>
    %c0_60 = arith.constant 0 : index
    %c0_61 = arith.constant 0 : index
    %150 = vector.load %arg13[%c0_60, %c0_61] : memref<1x64xf32, #tpu.memory_space<vmem>>, vector<1x64xf32>
    %151 = vector.shape_cast %150 : vector<1x64xf32> to vector<64xf32>
    %152 = vector.shape_cast %151 : vector<64xf32> to vector<1x64xf32>
    %153 = vector.broadcast %152 : vector<1x64xf32> to vector<8x64xf32>
    %154 = arith.addf %149, %153 : vector<8x64xf32>
    %cst_62 = arith.constant 0.000000e+00 : f32
    %155 = vector.broadcast %cst_62 : f32 to vector<8x64xf32>
    %156 = arith.maximumf %154, %155 : vector<8x64xf32>
    %157 = arith.truncf %156 : vector<8x64xf32> to vector<8x64xbf16>
    %c0_63 = arith.constant 0 : index
    %c0_64 = arith.constant 0 : index
    %158 = vector.load %arg14[%c0_63, %c0_64] : memref<64x32xbf16, #tpu.memory_space<vmem>>, vector<64x32xbf16>
    %cst_65 = arith.constant dense<0.000000e+00> : vector<8x32xf32>
    %159 = tpu.matmul %157, %158, %cst_65 {dimension_numbers = #tpu.dot_dimension_numbers<[1], [0], [0], [1], [0, 0, 1, 1], [], []>} : vector<8x64xbf16>, vector<64x32xbf16>, vector<8x32xf32> -> vector<8x32xf32>
    %c0_66 = arith.constant 0 : index
    %c0_67 = arith.constant 0 : index
    %160 = vector.load %arg15[%c0_66, %c0_67] : memref<1x32xf32, #tpu.memory_space<vmem>>, vector<1x32xf32>
    %161 = vector.shape_cast %160 : vector<1x32xf32> to vector<32xf32>
    %162 = vector.shape_cast %161 : vector<32xf32> to vector<1x32xf32>
    %163 = vector.broadcast %162 : vector<1x32xf32> to vector<8x32xf32>
    %164 = arith.addf %159, %163 : vector<8x32xf32>
    %165 = arith.addf %146, %164 : vector<8x32xf32>
    %c0_68 = arith.constant 0 : index
    %c0_69 = arith.constant 0 : index
    %166 = vector.load %arg18[%c0_68, %c0_69] : memref<1x32xf32, #tpu.memory_space<vmem>>, vector<1x32xf32>
    %167 = vector.shape_cast %166 : vector<1x32xf32> to vector<32xf32>
    %c0_70 = arith.constant 0 : index
    %c0_71 = arith.constant 0 : index
    %168 = vector.load %arg19[%c0_70, %c0_71] : memref<1x32xf32, #tpu.memory_space<vmem>>, vector<1x32xf32>
    %169 = vector.shape_cast %168 : vector<1x32xf32> to vector<32xf32>
    %cst_72 = arith.constant dense<0.000000e+00> : vector<8xf32>
    %170 = vector.multi_reduction <add>, %165, %cst_72 [1] : vector<8x32xf32> to vector<8xf32>
    %171 = vector.shape_cast %170 : vector<8xf32> to vector<8x1xf32>
    %cst_73 = arith.constant 3.200000e+01 : f32
    %172 = vector.broadcast %cst_73 : f32 to vector<8x1xf32>
    %173 = arith.divf %171, %172 : vector<8x1xf32>
    %174 = vector.broadcast %173 : vector<8x1xf32> to vector<8x32xf32>
    %175 = arith.subf %165, %174 : vector<8x32xf32>
    %176 = arith.mulf %175, %175 : vector<8x32xf32>
    %cst_74 = arith.constant dense<0.000000e+00> : vector<8xf32>
    %177 = vector.multi_reduction <add>, %176, %cst_74 [1] : vector<8x32xf32> to vector<8xf32>
    %178 = vector.shape_cast %177 : vector<8xf32> to vector<8x1xf32>
    %cst_75 = arith.constant 3.200000e+01 : f32
    %179 = vector.broadcast %cst_75 : f32 to vector<8x1xf32>
    %180 = arith.divf %178, %179 : vector<8x1xf32>
    %cst_76 = arith.constant 9.99999974E-6 : f32
    %181 = vector.broadcast %cst_76 : f32 to vector<8x1xf32>
    %182 = arith.addf %180, %181 : vector<8x1xf32>
    %183 = math.rsqrt %182 : vector<8x1xf32>
    %184 = vector.broadcast %173 : vector<8x1xf32> to vector<8x32xf32>
    %185 = arith.subf %165, %184 : vector<8x32xf32>
    %186 = vector.broadcast %183 : vector<8x1xf32> to vector<8x32xf32>
    %187 = arith.mulf %185, %186 : vector<8x32xf32>
    %188 = vector.shape_cast %167 : vector<32xf32> to vector<1x32xf32>
    %189 = vector.broadcast %188 : vector<1x32xf32> to vector<8x32xf32>
    %190 = arith.mulf %187, %189 : vector<8x32xf32>
    %191 = vector.shape_cast %169 : vector<32xf32> to vector<1x32xf32>
    %192 = vector.broadcast %191 : vector<1x32xf32> to vector<8x32xf32>
    %193 = arith.addf %190, %192 : vector<8x32xf32>
    %c0_77 = arith.constant 0 : index
    %c0_78 = arith.constant 0 : index
    %c0_79 = arith.constant 0 : index
    %194 = vector.load %arg20[%c0_77, %c0_78, %c0_79] : memref<1x8x32xf32, #tpu.memory_space<vmem>>, vector<1x8x32xf32>
    %195 = vector.shape_cast %194 : vector<1x8x32xf32> to vector<8x32xf32>
    %196 = vector.shape_cast %193 : vector<8x32xf32> to vector<1x8x32xf32>
    tpu.vector_store %arg20[%c0_77, %c0_78, %c0_79], %196 {strides = array<i32>} : memref<1x8x32xf32, #tpu.memory_space<vmem>>, vector<1x8x32xf32>,
    return
  }
  func.func @transform_0(%arg0: i32, %arg1: i32) -> (i32, i32, i32) {
    %c0_i32 = arith.constant 0 : i32
    %c0_i32_0 = arith.constant 0 : i32
    return %arg0, %arg1, %c0_i32 : i32, i32, i32
  }
  func.func @transform_1(%arg0: i32, %arg1: i32) -> (i32, i32, i32) {
    %c0_i32 = arith.constant 0 : i32
    %c0_i32_0 = arith.constant 0 : i32
    %c0_i32_1 = arith.constant 0 : i32
    return %arg0, %c0_i32, %c0_i32_0 : i32, i32, i32
  }
  func.func @transform_2(%arg0: i32, %arg1: i32) -> (i32, i32) {
    %c0_i32 = arith.constant 0 : i32
    %c0_i32_0 = arith.constant 0 : i32
    %c0_i32_1 = arith.constant 0 : i32
    return %c0_i32, %c0_i32_0 : i32, i32
  }
  func.func @transform_3(%arg0: i32, %arg1: i32) -> (i32, i32) {
    %c0_i32 = arith.constant 0 : i32
    %c0_i32_0 = arith.constant 0 : i32
    %c0_i32_1 = arith.constant 0 : i32
    return %c0_i32, %c0_i32_0 : i32, i32
  }
  func.func @transform_4(%arg0: i32, %arg1: i32) -> (i32, i32) {
    %c0_i32 = arith.constant 0 : i32
    %c0_i32_0 = arith.constant 0 : i32
    %c0_i32_1 = arith.constant 0 : i32
    return %c0_i32, %c0_i32_0 : i32, i32
  }
  func.func @transform_5(%arg0: i32, %arg1: i32) -> (i32, i32) {
    %c0_i32 = arith.constant 0 : i32
    %c0_i32_0 = arith.constant 0 : i32
    %c0_i32_1 = arith.constant 0 : i32
    return %c0_i32, %c0_i32_0 : i32, i32
  }
  func.func @transform_6(%arg0: i32, %arg1: i32) -> (i32, i32) {
    %c0_i32 = arith.constant 0 : i32
    %c0_i32_0 = arith.constant 0 : i32
    %c0_i32_1 = arith.constant 0 : i32
    return %c0_i32, %c0_i32_0 : i32, i32
  }
  func.func @transform_7(%arg0: i32, %arg1: i32) -> (i32, i32) {
    %c0_i32 = arith.constant 0 : i32
    %c0_i32_0 = arith.constant 0 : i32
    %c0_i32_1 = arith.constant 0 : i32
    return %c0_i32, %c0_i32_0 : i32, i32
  }
  func.func @transform_8(%arg0: i32, %arg1: i32) -> (i32, i32) {
    %c0_i32 = arith.constant 0 : i32
    %c0_i32_0 = arith.constant 0 : i32
    %c0_i32_1 = arith.constant 0 : i32
    return %c0_i32, %c0_i32_0 : i32, i32
  }
  func.func @transform_9(%arg0: i32, %arg1: i32) -> (i32, i32) {
    %c0_i32 = arith.constant 0 : i32
    %c0_i32_0 = arith.constant 0 : i32
    %c0_i32_1 = arith.constant 0 : i32
    return %c0_i32, %c0_i32_0 : i32, i32
  }
  func.func @transform_10(%arg0: i32, %arg1: i32) -> (i32, i32) {
    %c0_i32 = arith.constant 0 : i32
    %c0_i32_0 = arith.constant 0 : i32
    %c0_i32_1 = arith.constant 0 : i32
    return %c0_i32, %c0_i32_0 : i32, i32
  }
  func.func @transform_11(%arg0: i32, %arg1: i32) -> (i32, i32) {
    %c0_i32 = arith.constant 0 : i32
    %c0_i32_0 = arith.constant 0 : i32
    %c0_i32_1 = arith.constant 0 : i32
    return %c0_i32, %c0_i32_0 : i32, i32
  }
  func.func @transform_12(%arg0: i32, %arg1: i32) -> (i32, i32) {
    %c0_i32 = arith.constant 0 : i32
    %c0_i32_0 = arith.constant 0 : i32
    %c0_i32_1 = arith.constant 0 : i32
    return %c0_i32, %c0_i32_0 : i32, i32
  }
  func.func @transform_13(%arg0: i32, %arg1: i32) -> (i32, i32) {
    %c0_i32 = arith.constant 0 : i32
    %c0_i32_0 = arith.constant 0 : i32
    %c0_i32_1 = arith.constant 0 : i32
    return %c0_i32, %c0_i32_0 : i32, i32
  }
  func.func @transform_14(%arg0: i32, %arg1: i32) -> (i32, i32) {
    %c0_i32 = arith.constant 0 : i32
    %c0_i32_0 = arith.constant 0 : i32
    %c0_i32_1 = arith.constant 0 : i32
    return %c0_i32, %c0_i32_0 : i32, i32
  }
  func.func @transform_15(%arg0: i32, %arg1: i32) -> (i32, i32) {
    %c0_i32 = arith.constant 0 : i32
    %c0_i32_0 = arith.constant 0 : i32
    %c0_i32_1 = arith.constant 0 : i32
    return %c0_i32, %c0_i32_0 : i32, i32
  }
  func.func @transform_16(%arg0: i32, %arg1: i32) -> (i32, i32) {
    %c0_i32 = arith.constant 0 : i32
    %c0_i32_0 = arith.constant 0 : i32
    %c0_i32_1 = arith.constant 0 : i32
    return %c0_i32, %c0_i32_0 : i32, i32
  }
  func.func @transform_17(%arg0: i32, %arg1: i32) -> (i32, i32) {
    %c0_i32 = arith.constant 0 : i32
    %c0_i32_0 = arith.constant 0 : i32
    %c0_i32_1 = arith.constant 0 : i32
    return %c0_i32, %c0_i32_0 : i32, i32
  }
  func.func @transform_18(%arg0: i32, %arg1: i32) -> (i32, i32, i32) {
    %c0_i32 = arith.constant 0 : i32
    %c0_i32_0 = arith.constant 0 : i32
    return %arg0, %arg1, %c0_i32 : i32, i32, i32
  }
}

</mosaic_0001>

<llo_original>
// kernel: tpu_custom_call.1
$region0: #{tpu_custom_call.1}
  #allocation0 [shape = 'u32[]', space=smem, size = 0x4, offset = 0x4, fixed_abs, tag = 'smem constant byte address 0x4 - core index']
  #allocation1 [shape = 'u32[144,128]{1,0:T(1,128)}', space=vmem, size = 0x12000, scoped, tag = 'internal scratch']
  %s0 = inlined_call_operand.vmem [shape: f32[2,8,32], index: 0, kind: input, shape index: {}]
  %s1 = inlined_call_operand.vmem [shape: f32[2,8,32], index: 1, kind: input, shape index: {}]
  %s2 = inlined_call_operand.vmem [shape: bf16[32,32], index: 2, kind: input, shape index: {}]
  %s3 = inlined_call_operand.vmem [shape: f32[1,32], index: 3, kind: input, shape index: {}]
  %s4 = inlined_call_operand.hbm [shape: bf16[32,32], index: 4, kind: input, shape index: {}]
  %s5 = inlined_call_operand.vmem [shape: f32[1,32], index: 5, kind: input, shape index: {}]
  %s6 = inlined_call_operand.hbm [shape: bf16[32,32], index: 6, kind: input, shape index: {}]
  %s7 = inlined_call_operand.hbm [shape: f32[1,32], index: 7, kind: input, shape index: {}]
  %s8 = inlined_call_operand.hbm [shape: bf16[32,32], index: 8, kind: input, shape index: {}]
  %s9 = inlined_call_operand.hbm [shape: f32[1,32], index: 9, kind: input, shape index: {}]
  %s10 = inlined_call_operand.vmem [shape: bf16[32,64], index: 10, kind: input, shape index: {}]
  %s11 = inlined_call_operand.vmem [shape: f32[1,64], index: 11, kind: input, shape index: {}]
  %s12 = inlined_call_operand.vmem [shape: bf16[64,32], index: 12, kind: input, shape index: {}]
  %s13 = inlined_call_operand.vmem [shape: f32[1,32], index: 13, kind: input, shape index: {}]
  %s14 = inlined_call_operand.vmem [shape: f32[1,32], index: 14, kind: input, shape index: {}]
  %s15 = inlined_call_operand.vmem [shape: f32[1,32], index: 15, kind: input, shape index: {}]
  %s16 = inlined_call_operand.vmem [shape: f32[1,32], index: 16, kind: input, shape index: {}]
  %s17 = inlined_call_operand.vmem [shape: f32[1,32], index: 17, kind: input, shape index: {}]
  %s18 = inlined_call_operand.hbm [shape: f32[2,8,32], index: 18, kind: output, shape index: {}]
  %s19 = sld [smem:[#allocation0]]
  $region125: #{tpu_custom_call.1} parent=0
    _
  %s21 = ssub.s32 1, %s19
  %s22 = scalar_select 0, %s21, %s19
  $region1: #{tpu_custom_call.1} parent=0
    #allocation2 [shape = 'u8[8192]{0}', space=vmem, size = 0x2000, scoped, tag = 'input window, operand 4, single buffered']
    #allocation3 [shape = 's32[2]{0}', space=sflag, size = 0x8, scoped, tag = 'scoped memory for tpu_custom_call.1']
    #allocation4 [shape = 's32[2]{0}', space=sflag, size = 0x8, scoped, tag = 'scoped memory for tpu_custom_call.1']
    #allocation5 [shape = 'u8[8192]{0}', space=vmem, size = 0x2000, scoped, tag = 'input window, operand 6, single buffered']
    #allocation6 [shape = 's32[1]{0}', space=sflag, size = 0x4, scoped, tag = 'scoped memory for tpu_custom_call.1']
    #allocation7 [shape = 'u8[512]{0}', space=vmem, size = 0x400, scoped, tag = 'input window, operand 7, single buffered']
    #allocation8 [shape = 'u8[8192]{0}', space=vmem, size = 0x2000, scoped, tag = 'input window, operand 8, single buffered']
    #allocation9 [shape = 's32[1]{0}', space=sflag, size = 0x4, scoped, tag = 'scoped memory for tpu_custom_call.1']
    #allocation10 [shape = 'u8[512]{0}', space=vmem, size = 0x400, scoped, tag = 'input window, operand 9, single buffered']
    #allocation11 [shape = 'u8[8192]{0}', space=vmem, size = 0x2000, scoped, tag = 'output window, operand 0']
    %23 = vsyncpa [#allocation3], 0
    %24 = vsyncpa [#allocation6], 0
    %25 = vsyncpa [#allocation9], 0
    %26 = vsyncpa [#allocation4], 0
    %s27 = scalar_lea.sflag [#allocation4], 1
    %28 = vsyncpa %s27, 0
    loop: start=0, step=1, limit=4
    $region2: #{tpu_custom_call.1} parent=1 // loop_pre_header
      _
    $region3: #{tpu_custom_call.1} parent=1 // loop_header
      %s30 = sphi 0, %s34
      %p31 = scmp.ge.s32.totalorder %s30, 4
      %s37 = sphi 0, %s49
      %s38 = sphi 0, %s45
      %s39 = sphi 0, %s37
      %s40 = sphi 0, %s38
      %s41 = sphi 0, %s39
      %s42 = sphi 0, %s40
      %s54 = sphi 0, %s56
      %s57 = sphi 0, %s54
      %s58 = sphi 0, %s57
      %s74 = sphi 0, %s58
      %s80 = sphi 0, %s82
      %s83 = sphi 0, %s80
      %s84 = sphi 0, %s83
      %s100 = sphi 0, %s84
      %s104 = sphi 0, %s104
      %s106 = sphi 0, %s104
      %s107 = sphi 0, %s106
      %s121 = sphi 0, %s107
      %s125 = sphi 0, %s125
      %s127 = sphi 0, %s125
      %s128 = sphi 0, %s127
      %s142 = sphi 0, %s128
      %s146 = sphi 0, %s146
      %s148 = sphi 0, %s146
      %s149 = sphi 0, %s148
      %s163 = sphi 0, %s149
      %s167 = sphi 0, %s167
      %s169 = sphi 0, %s167
      %s170 = sphi 0, %s169
      %s184 = sphi 0, %s170
      %s188 = sphi 0, %s188
      %s190 = sphi 0, %s188
      %s191 = sphi 0, %s190
      %s205 = sphi 0, %s191
      %s209 = sphi 0, %s209
      %s211 = sphi 0, %s209
      %s212 = sphi 0, %s211
      %s226 = sphi 0, %s212
      %s230 = sphi 0, %s230
      %s232 = sphi 0, %s230
      %s233 = sphi 0, %s232
      %s247 = sphi 0, %s233
      %s251 = sphi 0, %s251
      %s253 = sphi 0, %s251
      %s254 = sphi 0, %s253
      %s268 = sphi 0, %s254
      %s272 = sphi 0, %s272
      %s274 = sphi 0, %s272
      %s275 = sphi 0, %s274
      %s289 = sphi 0, %s275
      %s293 = sphi 0, %s293
      %s295 = sphi 0, %s293
      %s296 = sphi 0, %s295
      %s310 = sphi 0, %s296
      %s314 = sphi 0, %s314
      %s316 = sphi 0, %s314
      %s317 = sphi 0, %s316
      %s331 = sphi 0, %s317
      %s335 = sphi 0, %s335
      %s337 = sphi 0, %s335
      %s338 = sphi 0, %s337
      %s352 = sphi 0, %s338
      %s356 = sphi 0, %s356
      %s358 = sphi 0, %s356
      %s359 = sphi 0, %s358
      %s373 = sphi 0, %s359
      %s377 = sphi 0, %s377
      %s379 = sphi 0, %s377
      %s380 = sphi 0, %s379
      %s394 = sphi 0, %s380
      %s398 = sphi 0, %s398
      %s400 = sphi 0, %s398
      %s401 = sphi 0, %s400
      %s415 = sphi 0, %s401
      %s419 = sphi 0, %s419
      %s421 = sphi 0, %s419
      %s422 = sphi 0, %s421
      %s436 = sphi 0, %s422
      %s444 = sphi 0, %s446
      %s447 = sphi 0, %s444
      %s448 = sphi 0, %s447
      %s464 = sphi 0, %s448
    $region4: #{tpu_custom_call.1} parent=1 // loop_header_branch
      %33 = sbr.rel (%p31) target = $region8
    $region5: #{tpu_custom_call.1} parent=1 // loop_body
      %s35 = ssub.s32 %s30, 1
      %s36 = ssub.s32 %s30, 2
      %s43 = sadd.s32 1, %s38
      %p44 = scmp.ge.s32.totalorder %s43, 1
      %s45 = scalar_select %p44, 0, %s43
      %s46 = sadd.s32 1, %s37
      %s47 = scalar_select %p44, %s46, %s37
      %p48 = scmp.ge.s32.totalorder %s47, 2
      %s49 = scalar_select %p48, 0, %s47
      %s50 = ssub.s32 %s37, %s49
      %s51 = ssub.s32 %s38, %s45
      %s52 = sor.u32 %s50, %s51
      %p53 = scmp.eq.s32.totalorder %s52, 0
      %s55 = sadd.s32 %s54, 1
      %s56 = scalar_select %p53, %s54, %s55
      %p59 = pneg %p53
      %p60 = scmp.eq.s32.totalorder %s30, 1
      %p61 = por %p59, %p60
      %p62 = scmp.ne.s32.totalorder %s54, %s57
      %p63 = scmp.eq.s32.totalorder %s30, 0
      %p64 = por %p62, %p63
      %p65 = scmp.ne.s32.totalorder %s54, %s57
      %p66 = scmp.eq.s32.totalorder %s35, 1
      %p67 = por %p65, %p66
      %p68 = scmp.ne.s32.totalorder %s57, %s58
      %p69 = scmp.eq.s32.totalorder %s35, 0
      %p70 = por %p68, %p69
      %p71 = scmp.ne.s32.totalorder %s57, %s58
      %p72 = scmp.eq.s32.totalorder %s36, 1
      %p73 = por %p71, %p72
      %p75 = scmp.ne.s32.totalorder %s58, %s74
      %p76 = scmp.eq.s32.totalorder %s36, 0
      %p77 = por %p75, %p76
      %s78 = ssub.s32 %s37, %s49
      %p79 = scmp.eq.s32.totalorder %s78, 0
      %s81 = sadd.s32 %s80, 1
      %s82 = scalar_select %p79, %s80, %s81
      %p85 = pneg %p79
      %p86 = scmp.eq.s32.totalorder %s30, 1
      %p87 = por %p85, %p86
      %p88 = scmp.ne.s32.totalorder %s80, %s83
      %p89 = scmp.eq.s32.totalorder %s30, 0
      %p90 = por %p88, %p89
      %p91 = scmp.ne.s32.totalorder %s80, %s83
      %p92 = scmp.eq.s32.totalorder %s35, 1
      %p93 = por %p91, %p92
      %p94 = scmp.ne.s32.totalorder %s83, %s84
      %p95 = scmp.eq.s32.totalorder %s35, 0
      %p96 = por %p94, %p95
      %p97 = scmp.ne.s32.totalorder %s83, %s84
      %p98 = scmp.eq.s32.totalorder %s36, 1
      %p99 = por %p97, %p98
      %p101 = scmp.ne.s32.totalorder %s84, %s100
      %p102 = scmp.eq.s32.totalorder %s36, 0
      %p103 = por %p101, %p102
      %s105 = sadd.s32 %s104, 1
      %p108 = scmp.eq.s32.totalorder %s30, 1
      %p109 = scmp.ne.s32.totalorder %s104, %s106
      %p110 = scmp.eq.s32.totalorder %s30, 0
      %p111 = por %p109, %p110
      %p112 = scmp.ne.s32.totalorder %s104, %s106
      %p113 = scmp.eq.s32.totalorder %s35, 1
      %p114 = por %p112, %p113
      %p115 = scmp.ne.s32.totalorder %s106, %s107
      %p116 = scmp.eq.s32.totalorder %s35, 0
      %p117 = por %p115, %p116
      %p118 = scmp.ne.s32.totalorder %s106, %s107
      %p119 = scmp.eq.s32.totalorder %s36, 1
      %p120 = por %p118, %p119
      %p122 = scmp.ne.s32.totalorder %s107, %s121
      %p123 = scmp.eq.s32.totalorder %s36, 0
      %p124 = por %p122, %p123
      %s126 = sadd.s32 %s125, 1
      %p129 = scmp.eq.s32.totalorder %s30, 1
      %p130 = scmp.ne.s32.totalorder %s125, %s127
      %p131 = scmp.eq.s32.totalorder %s30, 0
      %p132 = por %p130, %p131
      %p133 = scmp.ne.s32.totalorder %s125, %s127
      %p134 = scmp.eq.s32.totalorder %s35, 1
      %p135 = por %p133, %p134
      %p136 = scmp.ne.s32.totalorder %s127, %s128
      %p137 = scmp.eq.s32.totalorder %s35, 0
      %p138 = por %p136, %p137
      %p139 = scmp.ne.s32.totalorder %s127, %s128
      %p140 = scmp.eq.s32.totalorder %s36, 1
      %p141 = por %p139, %p140
      %p143 = scmp.ne.s32.totalorder %s128, %s142
      %p144 = scmp.eq.s32.totalorder %s36, 0
      %p145 = por %p143, %p144
      %s147 = sadd.s32 %s146, 1
      %p150 = scmp.eq.s32.totalorder %s30, 1
      %p151 = scmp.ne.s32.totalorder %s146, %s148
      %p152 = scmp.eq.s32.totalorder %s30, 0
      %p153 = por %p151, %p152
      %p154 = scmp.ne.s32.totalorder %s146, %s148
      %p155 = scmp.eq.s32.totalorder %s35, 1
      %p156 = por %p154, %p155
      %p157 = scmp.ne.s32.totalorder %s148, %s149
      %p158 = scmp.eq.s32.totalorder %s35, 0
      %p159 = por %p157, %p158
      %p160 = scmp.ne.s32.totalorder %s148, %s149
      %p161 = scmp.eq.s32.totalorder %s36, 1
      %p162 = por %p160, %p161
      %p164 = scmp.ne.s32.totalorder %s149, %s163
      %p165 = scmp.eq.s32.totalorder %s36, 0
      %p166 = por %p164, %p165
      %s168 = sadd.s32 %s167, 1
      %p171 = scmp.eq.s32.totalorder %s30, 1
      %p172 = scmp.ne.s32.totalorder %s167, %s169
      %p173 = scmp.eq.s32.totalorder %s30, 0
      %p174 = por %p172, %p173
      %p175 = scmp.ne.s32.totalorder %s167, %s169
      %p176 = scmp.eq.s32.totalorder %s35, 1
      %p177 = por %p175, %p176
      %p178 = scmp.ne.s32.totalorder %s169, %s170
      %p179 = scmp.eq.s32.totalorder %s35, 0
      %p180 = por %p178, %p179
      %p181 = scmp.ne.s32.totalorder %s169, %s170
      %p182 = scmp.eq.s32.totalorder %s36, 1
      %p183 = por %p181, %p182
      %p185 = scmp.ne.s32.totalorder %s170, %s184
      %p186 = scmp.eq.s32.totalorder %s36, 0
      %p187 = por %p185, %p186
      %s189 = sadd.s32 %s188, 1
      %p192 = scmp.eq.s32.totalorder %s30, 1
      %p193 = scmp.ne.s32.totalorder %s188, %s190
      %p194 = scmp.eq.s32.totalorder %s30, 0
      %p195 = por %p193, %p194
      %p196 = scmp.ne.s32.totalorder %s188, %s190
      %p197 = scmp.eq.s32.totalorder %s35, 1
      %p198 = por %p196, %p197
      %p199 = scmp.ne.s32.totalorder %s190, %s191
      %p200 = scmp.eq.s32.totalorder %s35, 0
      %p201 = por %p199, %p200
      %p202 = scmp.ne.s32.totalorder %s190, %s191
      %p203 = scmp.eq.s32.totalorder %s36, 1
      %p204 = por %p202, %p203
      %p206 = scmp.ne.s32.totalorder %s191, %s205
      %p207 = scmp.eq.s32.totalorder %s36, 0
      %p208 = por %p206, %p207
      %s210 = sadd.s32 %s209, 1
      %p213 = scmp.eq.s32.totalorder %s30, 1
      %p214 = scmp.ne.s32.totalorder %s209, %s211
      %p215 = scmp.eq.s32.totalorder %s30, 0
      %p216 = por %p214, %p215
      %p217 = scmp.ne.s32.totalorder %s209, %s211
      %p218 = scmp.eq.s32.totalorder %s35, 1
      %p219 = por %p217, %p218
      %p220 = scmp.ne.s32.totalorder %s211, %s212
      %p221 = scmp.eq.s32.totalorder %s35, 0
      %p222 = por %p220, %p221
      %p223 = scmp.ne.s32.totalorder %s211, %s212
      %p224 = scmp.eq.s32.totalorder %s36, 1
      %p225 = por %p223, %p224
      %p227 = scmp.ne.s32.totalorder %s212, %s226
      %p228 = scmp.eq.s32.totalorder %s36, 0
      %p229 = por %p227, %p228
      %s231 = sadd.s32 %s230, 1
      %p234 = scmp.eq.s32.totalorder %s30, 1
      %p235 = scmp.ne.s32.totalorder %s230, %s232
      %p236 = scmp.eq.s32.totalorder %s30, 0
      %p237 = por %p235, %p236
      %p238 = scmp.ne.s32.totalorder %s230, %s232
      %p239 = scmp.eq.s32.totalorder %s35, 1
      %p240 = por %p238, %p239
      %p241 = scmp.ne.s32.totalorder %s232, %s233
      %p242 = scmp.eq.s32.totalorder %s35, 0
      %p243 = por %p241, %p242
      %p244 = scmp.ne.s32.totalorder %s232, %s233
      %p245 = scmp.eq.s32.totalorder %s36, 1
      %p246 = por %p244, %p245
      %p248 = scmp.ne.s32.totalorder %s233, %s247
      %p249 = scmp.eq.s32.totalorder %s36, 0
      %p250 = por %p248, %p249
      %s252 = sadd.s32 %s251, 1
      %p255 = scmp.eq.s32.totalorder %s30, 1
      %p256 = scmp.ne.s32.totalorder %s251, %s253
      %p257 = scmp.eq.s32.totalorder %s30, 0
      %p258 = por %p256, %p257
      %p259 = scmp.ne.s32.totalorder %s251, %s253
      %p260 = scmp.eq.s32.totalorder %s35, 1
      %p261 = por %p259, %p260
      %p262 = scmp.ne.s32.totalorder %s253, %s254
      %p263 = scmp.eq.s32.totalorder %s35, 0
      %p264 = por %p262, %p263
      %p265 = scmp.ne.s32.totalorder %s253, %s254
      %p266 = scmp.eq.s32.totalorder %s36, 1
      %p267 = por %p265, %p266
      %p269 = scmp.ne.s32.totalorder %s254, %s268
      %p270 = scmp.eq.s32.totalorder %s36, 0
      %p271 = por %p269, %p270
      %s273 = sadd.s32 %s272, 1
      %p276 = scmp.eq.s32.totalorder %s30, 1
      %p277 = scmp.ne.s32.totalorder %s272, %s274
      %p278 = scmp.eq.s32.totalorder %s30, 0
      %p279 = por %p277, %p278
      %p280 = scmp.ne.s32.totalorder %s272, %s274
      %p281 = scmp.eq.s32.totalorder %s35, 1
      %p282 = por %p280, %p281
      %p283 = scmp.ne.s32.totalorder %s274, %s275
      %p284 = scmp.eq.s32.totalorder %s35, 0
      %p285 = por %p283, %p284
      %p286 = scmp.ne.s32.totalorder %s274, %s275
      %p287 = scmp.eq.s32.totalorder %s36, 1
      %p288 = por %p286, %p287
      %p290 = scmp.ne.s32.totalorder %s275, %s289
      %p291 = scmp.eq.s32.totalorder %s36, 0
      %p292 = por %p290, %p291
      %s294 = sadd.s32 %s293, 1
      %p297 = scmp.eq.s32.totalorder %s30, 1
      %p298 = scmp.ne.s32.totalorder %s293, %s295
      %p299 = scmp.eq.s32.totalorder %s30, 0
      %p300 = por %p298, %p299
      %p301 = scmp.ne.s32.totalorder %s293, %s295
      %p302 = scmp.eq.s32.totalorder %s35, 1
      %p303 = por %p301, %p302
      %p304 = scmp.ne.s32.totalorder %s295, %s296
      %p305 = scmp.eq.s32.totalorder %s35, 0
      %p306 = por %p304, %p305
      %p307 = scmp.ne.s32.totalorder %s295, %s296
      %p308 = scmp.eq.s32.totalorder %s36, 1
      %p309 = por %p307, %p308
      %p311 = scmp.ne.s32.totalorder %s296, %s310
      %p312 = scmp.eq.s32.totalorder %s36, 0
      %p313 = por %p311, %p312
      %s315 = sadd.s32 %s314, 1
      %p318 = scmp.eq.s32.totalorder %s30, 1
      %p319 = scmp.ne.s32.totalorder %s314, %s316
      %p320 = scmp.eq.s32.totalorder %s30, 0
      %p321 = por %p319, %p320
      %p322 = scmp.ne.s32.totalorder %s314, %s316
      %p323 = scmp.eq.s32.totalorder %s35, 1
      %p324 = por %p322, %p323
      %p325 = scmp.ne.s32.totalorder %s316, %s317
      %p326 = scmp.eq.s32.totalorder %s35, 0
      %p327 = por %p325, %p326
      %p328 = scmp.ne.s32.totalorder %s316, %s317
      %p329 = scmp.eq.s32.totalorder %s36, 1
      %p330 = por %p328, %p329
      %p332 = scmp.ne.s32.totalorder %s317, %s331
      %p333 = scmp.eq.s32.totalorder %s36, 0
      %p334 = por %p332, %p333
      %s336 = sadd.s32 %s335, 1
      %p339 = scmp.eq.s32.totalorder %s30, 1
      %p340 = scmp.ne.s32.totalorder %s335, %s337
      %p341 = scmp.eq.s32.totalorder %s30, 0
      %p342 = por %p340, %p341
      %p343 = scmp.ne.s32.totalorder %s335, %s337
      %p344 = scmp.eq.s32.totalorder %s35, 1
      %p345 = por %p343, %p344
      %p346 = scmp.ne.s32.totalorder %s337, %s338
      %p347 = scmp.eq.s32.totalorder %s35, 0
      %p348 = por %p346, %p347
      %p349 = scmp.ne.s32.totalorder %s337, %s338
      %p350 = scmp.eq.s32.totalorder %s36, 1
      %p351 = por %p349, %p350
      %p353 = scmp.ne.s32.totalorder %s338, %s352
      %p354 = scmp.eq.s32.totalorder %s36, 0
      %p355 = por %p353, %p354
      %s357 = sadd.s32 %s356, 1
      %p360 = scmp.eq.s32.totalorder %s30, 1
      %p361 = scmp.ne.s32.totalorder %s356, %s358
      %p362 = scmp.eq.s32.totalorder %s30, 0
      %p363 = por %p361, %p362
      %p364 = scmp.ne.s32.totalorder %s356, %s358
      %p365 = scmp.eq.s32.totalorder %s35, 1
      %p366 = por %p364, %p365
      %p367 = scmp.ne.s32.totalorder %s358, %s359
      %p368 = scmp.eq.s32.totalorder %s35, 0
      %p369 = por %p367, %p368
      %p370 = scmp.ne.s32.totalorder %s358, %s359
      %p371 = scmp.eq.s32.totalorder %s36, 1
      %p372 = por %p370, %p371
      %p374 = scmp.ne.s32.totalorder %s359, %s373
      %p375 = scmp.eq.s32.totalorder %s36, 0
      %p376 = por %p374, %p375
      %s378 = sadd.s32 %s377, 1
      %p381 = scmp.eq.s32.totalorder %s30, 1
      %p382 = scmp.ne.s32.totalorder %s377, %s379
      %p383 = scmp.eq.s32.totalorder %s30, 0
      %p384 = por %p382, %p383
      %p385 = scmp.ne.s32.totalorder %s377, %s379
      %p386 = scmp.eq.s32.totalorder %s35, 1
      %p387 = por %p385, %p386
      %p388 = scmp.ne.s32.totalorder %s379, %s380
      %p389 = scmp.eq.s32.totalorder %s35, 0
      %p390 = por %p388, %p389
      %p391 = scmp.ne.s32.totalorder %s379, %s380
      %p392 = scmp.eq.s32.totalorder %s36, 1
      %p393 = por %p391, %p392
      %p395 = scmp.ne.s32.totalorder %s380, %s394
      %p396 = scmp.eq.s32.totalorder %s36, 0
      %p397 = por %p395, %p396
      %s399 = sadd.s32 %s398, 1
      %p402 = scmp.eq.s32.totalorder %s30, 1
      %p403 = scmp.ne.s32.totalorder %s398, %s400
      %p404 = scmp.eq.s32.totalorder %s30, 0
      %p405 = por %p403, %p404
      %p406 = scmp.ne.s32.totalorder %s398, %s400
      %p407 = scmp.eq.s32.totalorder %s35, 1
      %p408 = por %p406, %p407
      %p409 = scmp.ne.s32.totalorder %s400, %s401
      %p410 = scmp.eq.s32.totalorder %s35, 0
      %p411 = por %p409, %p410
      %p412 = scmp.ne.s32.totalorder %s400, %s401
      %p413 = scmp.eq.s32.totalorder %s36, 1
      %p414 = por %p412, %p413
      %p416 = scmp.ne.s32.totalorder %s401, %s415
      %p417 = scmp.eq.s32.totalorder %s36, 0
      %p418 = por %p416, %p417
      %s420 = sadd.s32 %s419, 1
      %p423 = scmp.eq.s32.totalorder %s30, 1
      %p424 = scmp.ne.s32.totalorder %s419, %s421
      %p425 = scmp.eq.s32.totalorder %s30, 0
      %p426 = por %p424, %p425
      %p427 = scmp.ne.s32.totalorder %s419, %s421
      %p428 = scmp.eq.s32.totalorder %s35, 1
      %p429 = por %p427, %p428
      %p430 = scmp.ne.s32.totalorder %s421, %s422
      %p431 = scmp.eq.s32.totalorder %s35, 0
      %p432 = por %p430, %p431
      %p433 = scmp.ne.s32.totalorder %s421, %s422
      %p434 = scmp.eq.s32.totalorder %s36, 1
      %p435 = por %p433, %p434
      %p437 = scmp.ne.s32.totalorder %s422, %s436
      %p438 = scmp.eq.s32.totalorder %s36, 0
      %p439 = por %p437, %p438
      %s440 = ssub.s32 %s37, %s49
      %s441 = ssub.s32 %s38, %s45
      %s442 = sor.u32 %s440, %s441
      %p443 = scmp.eq.s32.totalorder %s442, 0
      %s445 = sadd.s32 %s444, 1
      %s446 = scalar_select %p443, %s444, %s445
      %p449 = pneg %p443
      %p450 = scmp.eq.s32.totalorder %s30, 1
      %p451 = por %p449, %p450
      %p452 = scmp.ne.s32.totalorder %s444, %s447
      %p453 = scmp.eq.s32.totalorder %s30, 0
      %p454 = por %p452, %p453
      %p455 = scmp.ne.s32.totalorder %s444, %s447
      %p456 = scmp.eq.s32.totalorder %s35, 1
      %p457 = por %p455, %p456
      %p458 = scmp.ne.s32.totalorder %s447, %s448
      %p459 = scmp.eq.s32.totalorder %s35, 0
      %p460 = por %p458, %p459
      %p461 = scmp.ne.s32.totalorder %s447, %s448
      %p462 = scmp.eq.s32.totalorder %s36, 1
      %p463 = por %p461, %p462
      %p465 = scmp.ne.s32.totalorder %s448, %s464
      %p466 = scmp.eq.s32.totalorder %s36, 0
      %p467 = por %p465, %p466
      %p468 = scmp.le.s32.totalorder 1, %s30
      %p469 = scmp.lt.s32.totalorder %s30, 3
      %p470 = pnand %p468, %p469
      %p471 = pneg %p470
      // Predicated region
      $region9: #{tpu_custom_call.1} parent=5 // pred_check
        _
      $region10: #{tpu_custom_call.1} parent=5 // pred_check_branch
        %473 = sbr.rel (%p470) target = $region12
      $region11: #{tpu_custom_call.1} parent=5 // pred_region
        %s474 = ssub.s32 %s30, 1
        // Predicated region
        $region13: #{tpu_custom_call.1} parent=11 // pred_check
          %p475 = pneg %p117
        $region14: #{tpu_custom_call.1} parent=11 // pred_check_branch
          %477 = sbr.rel (%p475) target = $region16
        $region15: #{tpu_custom_call.1} parent=11 // pred_region
          _
        $region16: #{tpu_custom_call.1} parent=11 // pred_fallthru
          _
        // Predicated region
        $region17: #{tpu_custom_call.1} parent=11 // pred_check
          %p478 = pneg %p138
        $region18: #{tpu_custom_call.1} parent=11 // pred_check_branch
          %480 = sbr.rel (%p478) target = $region20
        $region19: #{tpu_custom_call.1} parent=11 // pred_region
          _
        $region20: #{tpu_custom_call.1} parent=11 // pred_fallthru
          _
        // Predicated region
        $region21: #{tpu_custom_call.1} parent=11 // pred_check
          %p481 = pneg %p159
        $region22: #{tpu_custom_call.1} parent=11 // pred_check_branch
          %483 = sbr.rel (%p481) target = $region24
        $region23: #{tpu_custom_call.1} parent=11 // pred_region
          %s485 = ssub.s32 256, 256
          %486 = vsyncadd [#allocation3], %s485
          %s487 = sshll.u32 [#allocation2], 4
          %s488 = int_to_ptr.vmem [resolvable:$true] %s487
          %493 = dma.hbm_to_vmem [thread:$0]  %s4, 256, %s488, [#allocation3], 64, 64, 4
        $region24: #{tpu_custom_call.1} parent=11 // pred_fallthru
          _
        // Predicated region
        $region25: #{tpu_custom_call.1} parent=11 // pred_check
          %p494 = pneg %p180
        $region26: #{tpu_custom_call.1} parent=11 // pred_check_branch
          %496 = sbr.rel (%p494) target = $region28
        $region27: #{tpu_custom_call.1} parent=11 // pred_region
          _
        $region28: #{tpu_custom_call.1} parent=11 // pred_fallthru
          _
        // Predicated region
        $region29: #{tpu_custom_call.1} parent=11 // pred_check
          %p497 = pneg %p201
        $region30: #{tpu_custom_call.1} parent=11 // pred_check_branch
          %499 = sbr.rel (%p497) target = $region32
        $region31: #{tpu_custom_call.1} parent=11 // pred_region
          %s501 = ssub.s32 256, 256
          %502 = vsyncadd [#allocation6], %s501
          %s503 = sshll.u32 [#allocation5], 4
          %s504 = int_to_ptr.vmem [resolvable:$true] %s503
          %509 = dma.hbm_to_vmem [thread:$0]  %s6, 256, %s504, [#allocation6], 64, 64, 4
        $region32: #{tpu_custom_call.1} parent=11 // pred_fallthru
          _
        // Predicated region
        $region33: #{tpu_custom_call.1} parent=11 // pred_check
          %p510 = pneg %p222
        $region34: #{tpu_custom_call.1} parent=11 // pred_check_branch
          %512 = sbr.rel (%p510) target = $region36
        $region35: #{tpu_custom_call.1} parent=11 // pred_region
          %s514 = ssub.s32 16, 16
          %515 = vsyncadd [#allocation6], %s514
          %s517 = sshll.u32 [#allocation7], 4
          %s518 = int_to_ptr.vmem [resolvable:$true] %s517
          %520 = dma.hbm_to_vmem [thread:$0]  %s7, 16, %s518, [#allocation6]
        $region36: #{tpu_custom_call.1} parent=11 // pred_fallthru
          _
        // Predicated region
        $region37: #{tpu_custom_call.1} parent=11 // pred_check
          %p521 = pneg %p243
        $region38: #{tpu_custom_call.1} parent=11 // pred_check_branch
          %523 = sbr.rel (%p521) target = $region40
        $region39: #{tpu_custom_call.1} parent=11 // pred_region
          %s525 = ssub.s32 256, 256
          %526 = vsyncadd [#allocation9], %s525
          %s527 = sshll.u32 [#allocation8], 4
          %s528 = int_to_ptr.vmem [resolvable:$true] %s527
          %533 = dma.hbm_to_vmem [thread:$0]  %s8, 256, %s528, [#allocation9], 64, 64, 4
        $region40: #{tpu_custom_call.1} parent=11 // pred_fallthru
          _
        // Predicated region
        $region41: #{tpu_custom_call.1} parent=11 // pred_check
          %p534 = pneg %p264
        $region42: #{tpu_custom_call.1} parent=11 // pred_check_branch
          %536 = sbr.rel (%p534) target = $region44
        $region43: #{tpu_custom_call.1} parent=11 // pred_region
          %s538 = ssub.s32 16, 16
          %539 = vsyncadd [#allocation9], %s538
          %s541 = sshll.u32 [#allocation10], 4
          %s542 = int_to_ptr.vmem [resolvable:$true] %s541
          %544 = dma.hbm_to_vmem [thread:$0]  %s9, 16, %s542, [#allocation9]
        $region44: #{tpu_custom_call.1} parent=11 // pred_fallthru
          _
        // Predicated region
        $region45: #{tpu_custom_call.1} parent=11 // pred_check
          %p545 = pneg %p285
        $region46: #{tpu_custom_call.1} parent=11 // pred_check_branch
          %547 = sbr.rel (%p545) target = $region48
        $region47: #{tpu_custom_call.1} parent=11 // pred_region
          _
        $region48: #{tpu_custom_call.1} parent=11 // pred_fallthru
          _
        // Predicated region
        $region49: #{tpu_custom_call.1} parent=11 // pred_check
          %p548 = pneg %p306
        $region50: #{tpu_custom_call.1} parent=11 // pred_check_branch
          %550 = sbr.rel (%p548) target = $region52
        $region51: #{tpu_custom_call.1} parent=11 // pred_region
          _
        $region52: #{tpu_custom_call.1} parent=11 // pred_fallthru
          _
        // Predicated region
        $region53: #{tpu_custom_call.1} parent=11 // pred_check
          %p551 = pneg %p327
        $region54: #{tpu_custom_call.1} parent=11 // pred_check_branch
          %553 = sbr.rel (%p551) target = $region56
        $region55: #{tpu_custom_call.1} parent=11 // pred_region
          _
        $region56: #{tpu_custom_call.1} parent=11 // pred_fallthru
          _
        // Predicated region
        $region57: #{tpu_custom_call.1} parent=11 // pred_check
          %p554 = pneg %p348
        $region58: #{tpu_custom_call.1} parent=11 // pred_check_branch
          %556 = sbr.rel (%p554) target = $region60
        $region59: #{tpu_custom_call.1} parent=11 // pred_region
          _
        $region60: #{tpu_custom_call.1} parent=11 // pred_fallthru
          _
        // Predicated region
        $region61: #{tpu_custom_call.1} parent=11 // pred_check
          %p557 = pneg %p369
        $region62: #{tpu_custom_call.1} parent=11 // pred_check_branch
          %559 = sbr.rel (%p557) target = $region64
        $region63: #{tpu_custom_call.1} parent=11 // pred_region
          _
        $region64: #{tpu_custom_call.1} parent=11 // pred_fallthru
          _
        // Predicated region
        $region65: #{tpu_custom_call.1} parent=11 // pred_check
          %p560 = pneg %p390
        $region66: #{tpu_custom_call.1} parent=11 // pred_check_branch
          %562 = sbr.rel (%p560) target = $region68
        $region67: #{tpu_custom_call.1} parent=11 // pred_region
          _
        $region68: #{tpu_custom_call.1} parent=11 // pred_fallthru
          _
        // Predicated region
        $region69: #{tpu_custom_call.1} parent=11 // pred_check
          %p563 = pneg %p411
        $region70: #{tpu_custom_call.1} parent=11 // pred_check_branch
          %565 = sbr.rel (%p563) target = $region72
        $region71: #{tpu_custom_call.1} parent=11 // pred_region
          _
        $region72: #{tpu_custom_call.1} parent=11 // pred_fallthru
          _
        // Predicated region
        $region73: #{tpu_custom_call.1} parent=11 // pred_check
          %p566 = pneg %p432
        $region74: #{tpu_custom_call.1} parent=11 // pred_check_branch
          %568 = sbr.rel (%p566) target = $region76
        $region75: #{tpu_custom_call.1} parent=11 // pred_region
          _
        $region76: #{tpu_custom_call.1} parent=11 // pred_fallthru
          _
      $region12: #{tpu_custom_call.1} parent=5 // pred_fallthru
        _
      %p569 = scmp.lt.s32.totalorder %s30, 2
      // Predicated region
      $region77: #{tpu_custom_call.1} parent=5 // pred_check
        %p570 = pneg %p569
      $region78: #{tpu_custom_call.1} parent=5 // pred_check_branch
        %572 = sbr.rel (%p570) target = $region80
      $region79: #{tpu_custom_call.1} parent=5 // pred_region
        // Predicated region
        $region81: #{tpu_custom_call.1} parent=79 // pred_check
          %p573 = pneg %p64
        $region82: #{tpu_custom_call.1} parent=79 // pred_check_branch
          %575 = sbr.rel (%p573) target = $region84
        $region83: #{tpu_custom_call.1} parent=79 // pred_region
          %p576 = scmp.lt.s32.totalorder %s37, 1
          %s577 = scalar_select %p576, %s37, 1
          %p578 = scmp.lt.s32.totalorder %s38, 0
          %s579 = scalar_select %p578, %s38, 0
          %s580 = sadd.s32 %s579, %s577
          %s581 = smul.addr %s580, 8
          %s582 = scalar_lea.vmem %s0, %s581
        $region84: #{tpu_custom_call.1} parent=79 // pred_fallthru
          _
        // Predicated region
        $region85: #{tpu_custom_call.1} parent=79 // pred_check
          %p583 = pneg %p90
        $region86: #{tpu_custom_call.1} parent=79 // pred_check_branch
          %585 = sbr.rel (%p583) target = $region88
        $region87: #{tpu_custom_call.1} parent=79 // pred_region
          %p586 = scmp.lt.s32.totalorder %s37, 1
          %s587 = scalar_select %p586, %s37, 1
          %s588 = smul.addr %s587, 8
          %s589 = scalar_lea.vmem %s1, %s588
        $region88: #{tpu_custom_call.1} parent=79 // pred_fallthru
          _
      $region80: #{tpu_custom_call.1} parent=5 // pred_fallthru
        _
      %p590 = scmp.le.s32.totalorder 1, %s30
      %p591 = scmp.lt.s32.totalorder %s30, 3
      %p592 = pnand %p590, %p591
      %p593 = pneg %p592
      // Predicated region
      $region89: #{tpu_custom_call.1} parent=5 // pred_check
        _
      $region90: #{tpu_custom_call.1} parent=5 // pred_check_branch
        %595 = sbr.rel (%p592) target = $region92
      $region91: #{tpu_custom_call.1} parent=5 // pred_region
        %s596 = ssub.s32 %s30, 1
        // Predicated region
        $region93: #{tpu_custom_call.1} parent=91 // pred_check
          %p597 = pneg %p159
        $region94: #{tpu_custom_call.1} parent=91 // pred_check_branch
          %599 = sbr.rel (%p597) target = $region96
        $region95: #{tpu_custom_call.1} parent=91 // pred_region
          %600 = dma.done [#allocation3], 256
        $region96: #{tpu_custom_call.1} parent=91 // pred_fallthru
          _
        // Predicated region
        $region97: #{tpu_custom_call.1} parent=91 // pred_check
          %p601 = pneg %p201
        $region98: #{tpu_custom_call.1} parent=91 // pred_check_branch
          %603 = sbr.rel (%p601) target = $region100
        $region99: #{tpu_custom_call.1} parent=91 // pred_region
          %604 = dma.done [#allocation6], 256
        $region100: #{tpu_custom_call.1} parent=91 // pred_fallthru
          _
        // Predicated region
        $region101: #{tpu_custom_call.1} parent=91 // pred_check
          %p605 = pneg %p222
        $region102: #{tpu_custom_call.1} parent=91 // pred_check_branch
          %607 = sbr.rel (%p605) target = $region104
        $region103: #{tpu_custom_call.1} parent=91 // pred_region
          %608 = dma.done [#allocation6], 16
        $region104: #{tpu_custom_call.1} parent=91 // pred_fallthru
          _
        // Predicated region
        $region105: #{tpu_custom_call.1} parent=91 // pred_check
          %p609 = pneg %p243
        $region106: #{tpu_custom_call.1} parent=91 // pred_check_branch
          %611 = sbr.rel (%p609) target = $region108
        $region107: #{tpu_custom_call.1} parent=91 // pred_region
          %612 = dma.done [#allocation9], 256
        $region108: #{tpu_custom_call.1} parent=91 // pred_fallthru
          _
        // Predicated region
        $region109: #{tpu_custom_call.1} parent=91 // pred_check
          %p613 = pneg %p264
        $region110: #{tpu_custom_call.1} parent=91 // pred_check_branch
          %615 = sbr.rel (%p613) target = $region112
        $region111: #{tpu_custom_call.1} parent=91 // pred_region
          %616 = dma.done [#allocation9], 16
        $region112: #{tpu_custom_call.1} parent=91 // pred_fallthru
          _
        %p617 = scmp.lt.s32.totalorder %s39, 1
        %s618 = scalar_select %p617, %s39, 1
        %p619 = scmp.lt.s32.totalorder %s40, 0
        %s620 = scalar_select %p619, %s40, 0
        %s621 = sadd.s32 %s620, %s618
        %s622 = smul.addr %s621, 8
        %s623 = scalar_lea.vmem %s0, %s622
        %p624 = pneg %p70
        %p625 = pneg %p67
        %p626 = scmp.lt.s32.totalorder %s39, 1
        %s627 = scalar_select %p626, %s39, 1
        %s628 = smul.addr %s627, 8
        %s629 = scalar_lea.vmem %s1, %s628
        %p630 = pneg %p96
        %p631 = pneg %p93
        %p632 = pneg %p117
        %p633 = pneg %p114
        %p634 = pneg %p138
        %p635 = pneg %p135
        %p636 = pneg %p159
        %p637 = pneg %p156
        %p638 = pneg %p180
        %p639 = pneg %p177
        %p640 = pneg %p201
        %p641 = pneg %p198
        %p642 = pneg %p222
        %p643 = pneg %p219
        %p644 = pneg %p243
        %p645 = pneg %p240
        %p646 = pneg %p264
        %p647 = pneg %p261
        %p648 = pneg %p285
        %p649 = pneg %p282
        %p650 = pneg %p306
        %p651 = pneg %p303
        %p652 = pneg %p327
        %p653 = pneg %p324
        %p654 = pneg %p348
        %p655 = pneg %p345
        %p656 = pneg %p369
        %p657 = pneg %p366
        %p658 = pneg %p390
        %p659 = pneg %p387
        %p660 = pneg %p411
        %p661 = pneg %p408
        %p662 = pneg %p432
        %p663 = pneg %p429
        %p664 = pneg %p460
        %p665 = pneg %p457
        %s666 = sand.u32 %s447, 1
        %s667 = scalar_lea.sflag [#allocation4], %s666
        %s668 = sand.u32 %s447, 1
        %s669 = smul.addr %s668, 8
        %s670 = scalar_lea.vmem [#allocation11], %s669
        %p671 = scmp.lt.s32.totalorder %s39, 1
        %s672 = scalar_select %p671, %s39, 1
        %p673 = scmp.lt.s32.totalorder %s40, 0
        %s674 = scalar_select %p673, %s40, 0
        %s675 = sadd.s32 %s674, %s672
        %s676 = smul.addr %s675, 8
        %s677 = scalar_lea.vmem %s0, %s676
        %p678 = scmp.lt.s32.totalorder %s39, 1
        %s679 = scalar_select %p678, %s39, 1
        %s680 = smul.addr %s679, 8
        %s681 = scalar_lea.vmem %s1, %s680
        %v683 = vld [vmem:[%s677] sm:$0xff]
        %v684 = vld [vmem:[%s681] sm:$0xff]
        %v685 = vpack.c.bf16 %v683, %v683
        %v686 = vpack.c.bf16 %v684, %v684
        %v687 = vld [vmem:[%s2] sm:$0xf]
        %v688 = vld [vmem:[%s2 + $0x4] sm:$0xf]
        %v689 = vld [vmem:[%s2 + $0x8] sm:$0xf]
        %v690 = vld [vmem:[%s2 + $0xc] sm:$0xf]
        %v691 = vld [vmem:[%s3] sm:$0x1]
        %v693 = vlaneseq
        %v694 = vshrl.u32 %v693, 7
        %v695 = vsub.s32 0, %v694
        %v696 = vrot.slane %v691, %v695
        %v702 = vunpack.c.l.b16 %v687
        %v703 = vunpack.c.l.b16 %v688
        %v704 = vunpack.c.l.b16 %v689
        %v705 = vunpack.c.l.b16 %v690
        %v706 = vpack.c.b16 %v703, %v702
        %v707 = vpack.c.b16 %v705, %v704
        %vm710 = vcmask 261120
        %v712 = vsel %vm710, %v685, 0
        %714 = vmatprep.subr.bf16.mxu0 0
        %715 = vmatpush1.bf16.msra.mxu0 %v706
        %716 = vmatprep.subr.bf16.mxu0 0
        %717 = vmatpush1.bf16.msra.mxu0 %v707
        %718 = vmatprep.subr.bf16.mxu0 0
        %719 = vmatpush1.bf16.msra.mxu0 0
        %720 = vmatprep.subr.bf16.mxu0 0
        %721 = vmatpush1.bf16.msra.mxu0 0
        %722 = vmatprep.subr.bf16.mxu0 0
        %723 = vmatpush1.bf16.msra.mxu0 0
        %724 = vmatprep.subr.bf16.mxu0 0
        %725 = vmatpush1.bf16.msra.mxu0 0
        %726 = vmatprep.subr.bf16.mxu0 0
        %727 = vmatpush1.bf16.msra.mxu0 0
        %728 = vmatprep.subr.bf16.mxu0 0
        %729 = vmatpush1.bf16.msra.mxu0 0
        %730 = vmatprep.subr.bf16.mxu0 0
        %731 = vmatpush1.bf16.msra.mxu0 0
        %732 = vmatprep.subr.bf16.mxu0 0
        %733 = vmatpush1.bf16.msra.mxu0 0
        %734 = vmatprep.subr.bf16.mxu0 0
        %735 = vmatpush1.bf16.msra.mxu0 0
        %736 = vmatprep.subr.bf16.mxu0 0
        %737 = vmatpush1.bf16.msra.mxu0 0
        %738 = vmatprep.subr.bf16.mxu0 0
        %739 = vmatpush1.bf16.msra.mxu0 0
        %740 = vmatprep.subr.bf16.mxu0 0
        %741 = vmatpush1.bf16.msra.mxu0 0
        %742 = vmatprep.subr.bf16.mxu0 0
        %743 = vmatpush1.bf16.msra.mxu0 0
        %744 = vmatprep.subr.bf16.mxu0 0
        %745 = vmatpush1.bf16.msra.mxu0 0
        %746 = vmatprep.mubr.bf16.mxu0 0
        %747 = vmatmul.mubr.bf16.gmra.mrb[0].mxu0 %v712
        %v748 = vpop.f32.mrb[0].mxu0
        %v749 = vadd.f32 %v696, %v748
        %v750 = vpop.f32.mrb[0].mxu0
        %v751 = vpop.f32.mrb[0].mxu0
        %v752 = vpop.f32.mrb[0].mxu0
        %753 = vdwg.mxu0
        %v754 = vld [vmem:[#allocation2] sm:$0xf]
        %v755 = vld [vmem:[#allocation2 + $0x4] sm:$0xf]
        %v756 = vld [vmem:[#allocation2 + $0x8] sm:$0xf]
        %v757 = vld [vmem:[#allocation2 + $0xc] sm:$0xf]
        %v758 = vld [vmem:[%s5] sm:$0x1]
        %v760 = vlaneseq
        %v761 = vshrl.u32 %v760, 7
        %v762 = vsub.s32 0, %v761
        %v763 = vrot.slane %v758, %v762
        %v769 = vunpack.c.l.b16 %v754
        %v770 = vunpack.c.l.b16 %v755
        %v771 = vunpack.c.l.b16 %v756
        %v772 = vunpack.c.l.b16 %v757
        %v773 = vpack.c.b16 %v770, %v769
        %v774 = vpack.c.b16 %v772, %v771
        %v778 = vsel %vm710, %v686, 0
        %780 = vmatprep.subr.bf16.mxu0 0
        %781 = vmatpush1.bf16.msra.mxu0 %v773
        %782 = vmatprep.subr.bf16.mxu0 0
        %783 = vmatpush1.bf16.msra.mxu0 %v774
        %784 = vmatprep.subr.bf16.mxu0 0
        %785 = vmatpush1.bf16.msra.mxu0 0
        %786 = vmatprep.subr.bf16.mxu0 0
        %787 = vmatpush1.bf16.msra.mxu0 0
        %788 = vmatprep.subr.bf16.mxu0 0
        %789 = vmatpush1.bf16.msra.mxu0 0
        %790 = vmatprep.subr.bf16.mxu0 0
        %791 = vmatpush1.bf16.msra.mxu0 0
        %792 = vmatprep.subr.bf16.mxu0 0
        %793 = vmatpush1.bf16.msra.mxu0 0
        %794 = vmatprep.subr.bf16.mxu0 0
        %795 = vmatpush1.bf16.msra.mxu0 0
        %796 = vmatprep.subr.bf16.mxu0 0
        %797 = vmatpush1.bf16.msra.mxu0 0
        %798 = vmatprep.subr.bf16.mxu0 0
        %799 = vmatpush1.bf16.msra.mxu0 0
        %800 = vmatprep.subr.bf16.mxu0 0
        %801 = vmatpush1.bf16.msra.mxu0 0
        %802 = vmatprep.subr.bf16.mxu0 0
        %803 = vmatpush1.bf16.msra.mxu0 0
        %804 = vmatprep.subr.bf16.mxu0 0
        %805 = vmatpush1.bf16.msra.mxu0 0
        %806 = vmatprep.subr.bf16.mxu0 0
        %807 = vmatpush1.bf16.msra.mxu0 0
        %808 = vmatprep.subr.bf16.mxu0 0
        %809 = vmatpush1.bf16.msra.mxu0 0
        %810 = vmatprep.subr.bf16.mxu0 0
        %811 = vmatpush1.bf16.msra.mxu0 0
        %812 = vmatprep.mubr.bf16.mxu0 0
        %813 = vmatmul.mubr.bf16.gmra.mrb[0].mxu0 %v778
        %v814 = vpop.f32.mrb[0].mxu0
        %v815 = vadd.f32 %v763, %v814
        %v816 = vpop.f32.mrb[0].mxu0
        %v817 = vpop.f32.mrb[0].mxu0
        %v818 = vpop.f32.mrb[0].mxu0
        %819 = vdwg.mxu0
        %v820 = vld [vmem:[#allocation5] sm:$0xf]
        %v821 = vld [vmem:[#allocation5 + $0x4] sm:$0xf]
        %v822 = vld [vmem:[#allocation5 + $0x8] sm:$0xf]
        %v823 = vld [vmem:[#allocation5 + $0xc] sm:$0xf]
        %v824 = vld [vmem:[#allocation7] sm:$0x1]
        %v826 = vlaneseq
        %v827 = vshrl.u32 %v826, 7
        %v828 = vsub.s32 0, %v827
        %v829 = vrot.slane %v824, %v828
        %v835 = vunpack.c.l.b16 %v820
        %v836 = vunpack.c.l.b16 %v821
        %v837 = vunpack.c.l.b16 %v822
        %v838 = vunpack.c.l.b16 %v823
        %v839 = vpack.c.b16 %v836, %v835
        %v840 = vpack.c.b16 %v838, %v837
        %843 = vmatprep.subr.bf16.mxu0 0
        %844 = vmatpush1.bf16.msra.mxu0 %v839
        %845 = vmatprep.subr.bf16.mxu0 0
        %846 = vmatpush1.bf16.msra.mxu0 %v840
        %847 = vmatprep.subr.bf16.mxu0 0
        %848 = vmatpush1.bf16.msra.mxu0 0
        %849 = vmatprep.subr.bf16.mxu0 0
        %850 = vmatpush1.bf16.msra.mxu0 0
        %851 = vmatprep.subr.bf16.mxu0 0
        %852 = vmatpush1.bf16.msra.mxu0 0
        %853 = vmatprep.subr.bf16.mxu0 0
        %854 = vmatpush1.bf16.msra.mxu0 0
        %855 = vmatprep.subr.bf16.mxu0 0
        %856 = vmatpush1.bf16.msra.mxu0 0
        %857 = vmatprep.subr.bf16.mxu0 0
        %858 = vmatpush1.bf16.msra.mxu0 0
        %859 = vmatprep.subr.bf16.mxu0 0
        %860 = vmatpush1.bf16.msra.mxu0 0
        %861 = vmatprep.subr.bf16.mxu0 0
        %862 = vmatpush1.bf16.msra.mxu0 0
        %863 = vmatprep.subr.bf16.mxu0 0
        %864 = vmatpush1.bf16.msra.mxu0 0
        %865 = vmatprep.subr.bf16.mxu0 0
        %866 = vmatpush1.bf16.msra.mxu0 0
        %867 = vmatprep.subr.bf16.mxu0 0
        %868 = vmatpush1.bf16.msra.mxu0 0
        %869 = vmatprep.subr.bf16.mxu0 0
        %870 = vmatpush1.bf16.msra.mxu0 0
        %871 = vmatprep.subr.bf16.mxu0 0
        %872 = vmatpush1.bf16.msra.mxu0 0
        %873 = vmatprep.subr.bf16.mxu0 0
        %874 = vmatpush1.bf16.msra.mxu0 0
        %875 = vmatprep.mubr.bf16.mxu0 0
        %876 = vmatmul.mubr.bf16.gmra.mrb[0].mxu0 %v778
        %v877 = vpop.f32.mrb[0].mxu0
        %v878 = vadd.f32 %v829, %v877
        %v879 = vpop.f32.mrb[0].mxu0
        %v880 = vpop.f32.mrb[0].mxu0
        %v881 = vpop.f32.mrb[0].mxu0
        %882 = vdwg.mxu0
        %v883 = vmul.f32 %v749, 0.35355338
        %v884 = vpack.c.bf16 %v883, %v883
        %v885 = vpack.c.bf16 %v815, %v815
        %v886 = vpack.c.bf16 %v878, %v878
        %vm887 = vcmask 64512
        %v889 = vsel %vm887, %v884, 0
        %v892 = vsel %vm887, %v885, 0
        %894 = vmatprep.subr.bf16.mxu0 0
        %895 = vmatpush1.bf16.xpose.msra.mxu0 %v892
        %896 = vmatprep.subr.bf16.mxu0 0
        %897 = vmatpush1.bf16.xpose.msra.mxu0 0
        %898 = vmatprep.subr.bf16.mxu0 0
        %899 = vmatpush1.bf16.xpose.msra.mxu0 0
        %900 = vmatprep.subr.bf16.mxu0 0
        %901 = vmatpush1.bf16.xpose.msra.mxu0 0
        %902 = vmatprep.subr.bf16.mxu0 0
        %903 = vmatpush1.bf16.xpose.msra.mxu0 0
        %904 = vmatprep.subr.bf16.mxu0 0
        %905 = vmatpush1.bf16.xpose.msra.mxu0 0
        %906 = vmatprep.subr.bf16.mxu0 0
        %907 = vmatpush1.bf16.xpose.msra.mxu0 0
        %908 = vmatprep.subr.bf16.mxu0 0
        %909 = vmatpush1.bf16.xpose.msra.mxu0 0
        %910 = vmatprep.subr.bf16.mxu0 0
        %911 = vmatpush1.bf16.xpose.msra.mxu0 0
        %912 = vmatprep.subr.bf16.mxu0 0
        %913 = vmatpush1.bf16.xpose.msra.mxu0 0
        %914 = vmatprep.subr.bf16.mxu0 0
        %915 = vmatpush1.bf16.xpose.msra.mxu0 0
        %916 = vmatprep.subr.bf16.mxu0 0
        %917 = vmatpush1.bf16.xpose.msra.mxu0 0
        %918 = vmatprep.subr.bf16.mxu0 0
        %919 = vmatpush1.bf16.xpose.msra.mxu0 0
        %920 = vmatprep.subr.bf16.mxu0 0
        %921 = vmatpush1.bf16.xpose.msra.mxu0 0
        %922 = vmatprep.subr.bf16.mxu0 0
        %923 = vmatpush1.bf16.xpose.msra.mxu0 0
        %924 = vmatprep.subr.bf16.mxu0 0
        %925 = vmatpush1.bf16.xpose.msra.mxu0 0
        %926 = vmatprep.mubr.bf16.mxu0 0
        %927 = vmatmul.mubr.bf16.gmra.mrb[0].mxu0 %v889
        %v928 = vpop.f32.mrb[0].mxu0
        %v929 = vadd.f32 0.0, %v928
        %v930 = vpop.f32.mrb[0].mxu0
        %v931 = vpop.f32.mrb[0].mxu0
        %v932 = vpop.f32.mrb[0].mxu0
        %933 = vdwg.mxu0
        %v934 = vsel %vm887, %v929, -inf
        %935 = vmax.xlane.f32.xlu0 %v934
        %v936 = vpop.xlane.xlu0 %935
        %v937 = vsub.f32 %v929, %v936
        %v938 = vmul.f32 %v937, 1.442695
        %v939 = vpow.pop %v938
        %v940 = vsel %vm887, %v939, 0.0
        %941 = vadd.xlane.f32.xlu0 %v940
        %v942 = vpop.xlane.xlu0 %941
        %v943 = vrcp.pop %v942
        %v944 = vmul.f32 %v939, %v943
        %v945 = vpack.c.bf16 %v944, %v944
        %v947 = vsel %vm887, %v945, 0
        %vm949 = vcmask 1043456
        %v951 = vsel %vm949, %v886, 0
        %953 = vmatprep.subr.bf16.mxu0 0
        %954 = vmatpush1.bf16.msra.mxu0 %v951
        %955 = vmatprep.subr.bf16.mxu0 0
        %956 = vmatpush1.bf16.msra.mxu0 0
        %957 = vmatprep.subr.bf16.mxu0 0
        %958 = vmatpush1.bf16.msra.mxu0 0
        %959 = vmatprep.subr.bf16.mxu0 0
        %960 = vmatpush1.bf16.msra.mxu0 0
        %961 = vmatprep.subr.bf16.mxu0 0
        %962 = vmatpush1.bf16.msra.mxu0 0
        %963 = vmatprep.subr.bf16.mxu0 0
        %964 = vmatpush1.bf16.msra.mxu0 0
        %965 = vmatprep.subr.bf16.mxu0 0
        %966 = vmatpush1.bf16.msra.mxu0 0
        %967 = vmatprep.subr.bf16.mxu0 0
        %968 = vmatpush1.bf16.msra.mxu0 0
        %969 = vmatprep.subr.bf16.mxu0 0
        %970 = vmatpush1.bf16.msra.mxu0 0
        %971 = vmatprep.subr.bf16.mxu0 0
        %972 = vmatpush1.bf16.msra.mxu0 0
        %973 = vmatprep.subr.bf16.mxu0 0
        %974 = vmatpush1.bf16.msra.mxu0 0
        %975 = vmatprep.subr.bf16.mxu0 0
        %976 = vmatpush1.bf16.msra.mxu0 0
        %977 = vmatprep.subr.bf16.mxu0 0
        %978 = vmatpush1.bf16.msra.mxu0 0
        %979 = vmatprep.subr.bf16.mxu0 0
        %980 = vmatpush1.bf16.msra.mxu0 0
        %981 = vmatprep.subr.bf16.mxu0 0
        %982 = vmatpush1.bf16.msra.mxu0 0
        %983 = vmatprep.subr.bf16.mxu0 0
        %984 = vmatpush1.bf16.msra.mxu0 0
        %985 = vmatprep.mubr.bf16.mxu0 0
        %986 = vmatmul.mubr.bf16.gmra.mrb[0].mxu0 %v947
        %v987 = vpop.f32.mrb[0].mxu0
        %v988 = vadd.f32 0.0, %v987
        %v989 = vpop.f32.mrb[0].mxu0
        %v990 = vpop.f32.mrb[0].mxu0
        %v991 = vpop.f32.mrb[0].mxu0
        %992 = vdwg.mxu0
        %v993 = vpack.c.bf16 %v988, %v988
        %v994 = vld [vmem:[#allocation8] sm:$0xf]
        %996 = vrot.lane.b32.xlu0 %v884, 120
        %v997 = vpop.permute.xlu0 %996
        %999 = vrot.lane.b32.xlu0 %v885, 120
        %v1000 = vpop.permute.xlu0 %999
        %v1002 = vsel %vm887, %v997, 0
        %v1005 = vsel %vm887, %v1000, 0
        %1007 = vmatprep.subr.bf16.mxu0 0
        %1008 = vmatpush1.bf16.xpose.msra.mxu0 %v1005
        %1009 = vmatprep.subr.bf16.mxu0 0
        %1010 = vmatpush1.bf16.xpose.msra.mxu0 0
        %1011 = vmatprep.subr.bf16.mxu0 0
        %1012 = vmatpush1.bf16.xpose.msra.mxu0 0
        %1013 = vmatprep.subr.bf16.mxu0 0
        %1014 = vmatpush1.bf16.xpose.msra.mxu0 0
        %1015 = vmatprep.subr.bf16.mxu0 0
        %1016 = vmatpush1.bf16.xpose.msra.mxu0 0
        %1017 = vmatprep.subr.bf16.mxu0 0
        %1018 = vmatpush1.bf16.xpose.msra.mxu0 0
        %1019 = vmatprep.subr.bf16.mxu0 0
        %1020 = vmatpush1.bf16.xpose.msra.mxu0 0
        %1021 = vmatprep.subr.bf16.mxu0 0
        %1022 = vmatpush1.bf16.xpose.msra.mxu0 0
        %1023 = vmatprep.subr.bf16.mxu0 0
        %1024 = vmatpush1.bf16.xpose.msra.mxu0 0
        %1025 = vmatprep.subr.bf16.mxu0 0
        %1026 = vmatpush1.bf16.xpose.msra.mxu0 0
        %1027 = vmatprep.subr.bf16.mxu0 0
        %1028 = vmatpush1.bf16.xpose.msra.mxu0 0
        %1029 = vmatprep.subr.bf16.mxu0 0
        %1030 = vmatpush1.bf16.xpose.msra.mxu0 0
        %1031 = vmatprep.subr.bf16.mxu0 0
        %1032 = vmatpush1.bf16.xpose.msra.mxu0 0
        %1033 = vmatprep.subr.bf16.mxu0 0
        %1034 = vmatpush1.bf16.xpose.msra.mxu0 0
        %1035 = vmatprep.subr.bf16.mxu0 0
        %1036 = vmatpush1.bf16.xpose.msra.mxu0 0
        %1037 = vmatprep.subr.bf16.mxu0 0
        %1038 = vmatpush1.bf16.xpose.msra.mxu0 0
        %1039 = vmatprep.mubr.bf16.mxu0 0
        %1040 = vmatmul.mubr.bf16.gmra.mrb[0].mxu0 %v1002
        %v1041 = vpop.f32.mrb[0].mxu0
        %v1042 = vadd.f32 0.0, %v1041
        %v1043 = vpop.f32.mrb[0].mxu0
        %v1044 = vpop.f32.mrb[0].mxu0
        %v1045 = vpop.f32.mrb[0].mxu0
        %1046 = vdwg.mxu0
        %v1047 = vsel %vm887, %v1042, -inf
        %1048 = vmax.xlane.f32.xlu0 %v1047
        %v1049 = vpop.xlane.xlu0 %1048
        %v1050 = vsub.f32 %v1042, %v1049
        %v1051 = vmul.f32 %v1050, 1.442695
        %v1052 = vpow.pop %v1051
        %v1053 = vsel %vm887, %v1052, 0.0
        %1054 = vadd.xlane.f32.xlu0 %v1053
        %v1055 = vpop.xlane.xlu0 %1054
        %v1056 = vrcp.pop %v1055
        %v1057 = vmul.f32 %v1052, %v1056
        %v1058 = vpack.c.bf16 %v1057, %v1057
        %1060 = vrot.lane.b32.xlu0 %v886, 120
        %v1061 = vpop.permute.xlu0 %1060
        %v1063 = vsel %vm887, %v1058, 0
        %v1066 = vsel %vm949, %v1061, 0
        %1068 = vmatprep.subr.bf16.mxu0 0
        %1069 = vmatpush1.bf16.msra.mxu0 %v1066
        %1070 = vmatprep.subr.bf16.mxu0 0
        %1071 = vmatpush1.bf16.msra.mxu0 0
        %1072 = vmatprep.subr.bf16.mxu0 0
        %1073 = vmatpush1.bf16.msra.mxu0 0
        %1074 = vmatprep.subr.bf16.mxu0 0
        %1075 = vmatpush1.bf16.msra.mxu0 0
        %1076 = vmatprep.subr.bf16.mxu0 0
        %1077 = vmatpush1.bf16.msra.mxu0 0
        %1078 = vmatprep.subr.bf16.mxu0 0
        %1079 = vmatpush1.bf16.msra.mxu0 0
        %1080 = vmatprep.subr.bf16.mxu0 0
        %1081 = vmatpush1.bf16.msra.mxu0 0
        %1082 = vmatprep.subr.bf16.mxu0 0
        %1083 = vmatpush1.bf16.msra.mxu0 0
        %1084 = vmatprep.subr.bf16.mxu0 0
        %1085 = vmatpush1.bf16.msra.mxu0 0
        %1086 = vmatprep.subr.bf16.mxu0 0
        %1087 = vmatpush1.bf16.msra.mxu0 0
        %1088 = vmatprep.subr.bf16.mxu0 0
        %1089 = vmatpush1.bf16.msra.mxu0 0
        %1090 = vmatprep.subr.bf16.mxu0 0
        %1091 = vmatpush1.bf16.msra.mxu0 0
        %1092 = vmatprep.subr.bf16.mxu0 0
        %1093 = vmatpush1.bf16.msra.mxu0 0
        %1094 = vmatprep.subr.bf16.mxu0 0
        %1095 = vmatpush1.bf16.msra.mxu0 0
        %1096 = vmatprep.subr.bf16.mxu0 0
        %1097 = vmatpush1.bf16.msra.mxu0 0
        %1098 = vmatprep.subr.bf16.mxu0 0
        %1099 = vmatpush1.bf16.msra.mxu0 0
        %1100 = vmatprep.mubr.bf16.mxu0 0
        %1101 = vmatmul.mubr.bf16.gmra.mrb[0].mxu0 %v1063
        %v1102 = vpop.f32.mrb[0].mxu0
        %v1103 = vadd.f32 0.0, %v1102
        %v1104 = vpop.f32.mrb[0].mxu0
        %v1105 = vpop.f32.mrb[0].mxu0
        %v1106 = vpop.f32.mrb[0].mxu0
        %1107 = vdwg.mxu0
        %v1108 = vpack.c.bf16 %v1103, %v1103
        %v1109 = vld [vmem:[#allocation8 + $0x4] sm:$0xf]
        %v1111 = vsel %vm887, %v1108, 0
        %v1114 = vsel %vm949, %v1109, 0
        %1116 = vmatprep.subr.bf16.mxu0 0
        %1117 = vmatpush1.bf16.msra.mxu0 %v1114
        %1118 = vmatprep.subr.bf16.mxu0 0
        %1119 = vmatpush1.bf16.msra.mxu0 0
        %1120 = vmatprep.subr.bf16.mxu0 0
        %1121 = vmatpush1.bf16.msra.mxu0 0
        %1122 = vmatprep.subr.bf16.mxu0 0
        %1123 = vmatpush1.bf16.msra.mxu0 0
        %1124 = vmatprep.subr.bf16.mxu0 0
        %1125 = vmatpush1.bf16.msra.mxu0 0
        %1126 = vmatprep.subr.bf16.mxu0 0
        %1127 = vmatpush1.bf16.msra.mxu0 0
        %1128 = vmatprep.subr.bf16.mxu0 0
        %1129 = vmatpush1.bf16.msra.mxu0 0
        %1130 = vmatprep.subr.bf16.mxu0 0
        %1131 = vmatpush1.bf16.msra.mxu0 0
        %1132 = vmatprep.subr.bf16.mxu0 0
        %1133 = vmatpush1.bf16.msra.mxu0 0
        %1134 = vmatprep.subr.bf16.mxu0 0
        %1135 = vmatpush1.bf16.msra.mxu0 0
        %1136 = vmatprep.subr.bf16.mxu0 0
        %1137 = vmatpush1.bf16.msra.mxu0 0
        %1138 = vmatprep.subr.bf16.mxu0 0
        %1139 = vmatpush1.bf16.msra.mxu0 0
        %1140 = vmatprep.subr.bf16.mxu0 0
        %1141 = vmatpush1.bf16.msra.mxu0 0
        %1142 = vmatprep.subr.bf16.mxu0 0
        %1143 = vmatpush1.bf16.msra.mxu0 0
        %1144 = vmatprep.subr.bf16.mxu0 0
        %1145 = vmatpush1.bf16.msra.mxu0 0
        %1146 = vmatprep.subr.bf16.mxu0 0
        %1147 = vmatpush1.bf16.msra.mxu0 0
        %1148 = vmatprep.mubr.bf16.mxu0 0
        %1149 = vmatmul.mubr.bf16.gmra.mrb[0].mxu0 %v1111
        %v1150 = vpop.f32.mrb[0].mxu0
        %v1151 = vadd.f32 0.0, %v1150
        %v1152 = vpop.f32.mrb[0].mxu0
        %v1153 = vpop.f32.mrb[0].mxu0
        %v1154 = vpop.f32.mrb[0].mxu0
        %1155 = vdwg.mxu0
        %v1157 = vsel %vm887, %v993, 0
        %v1160 = vsel %vm949, %v994, 0
        %1162 = vmatprep.subr.bf16.mxu0 0
        %1163 = vmatpush1.bf16.msra.mxu0 %v1160
        %1164 = vmatprep.subr.bf16.mxu0 0
        %1165 = vmatpush1.bf16.msra.mxu0 0
        %1166 = vmatprep.subr.bf16.mxu0 0
        %1167 = vmatpush1.bf16.msra.mxu0 0
        %1168 = vmatprep.subr.bf16.mxu0 0
        %1169 = vmatpush1.bf16.msra.mxu0 0
        %1170 = vmatprep.subr.bf16.mxu0 0
        %1171 = vmatpush1.bf16.msra.mxu0 0
        %1172 = vmatprep.subr.bf16.mxu0 0
        %1173 = vmatpush1.bf16.msra.mxu0 0
        %1174 = vmatprep.subr.bf16.mxu0 0
        %1175 = vmatpush1.bf16.msra.mxu0 0
        %1176 = vmatprep.subr.bf16.mxu0 0
        %1177 = vmatpush1.bf16.msra.mxu0 0
        %1178 = vmatprep.subr.bf16.mxu0 0
        %1179 = vmatpush1.bf16.msra.mxu0 0
        %1180 = vmatprep.subr.bf16.mxu0 0
        %1181 = vmatpush1.bf16.msra.mxu0 0
        %1182 = vmatprep.subr.bf16.mxu0 0
        %1183 = vmatpush1.bf16.msra.mxu0 0
        %1184 = vmatprep.subr.bf16.mxu0 0
        %1185 = vmatpush1.bf16.msra.mxu0 0
        %1186 = vmatprep.subr.bf16.mxu0 0
        %1187 = vmatpush1.bf16.msra.mxu0 0
        %1188 = vmatprep.subr.bf16.mxu0 0
        %1189 = vmatpush1.bf16.msra.mxu0 0
        %1190 = vmatprep.subr.bf16.mxu0 0
        %1191 = vmatpush1.bf16.msra.mxu0 0
        %1192 = vmatprep.subr.bf16.mxu0 0
        %1193 = vmatpush1.bf16.msra.mxu0 0
        %1194 = vmatprep.mubr.bf16.mxu0 0
        %1195 = vmatmul.mubr.bf16.gmra.mrb[0].mxu0 %v1157
        %v1196 = vpop.f32.mrb[0].mxu0
        %v1197 = vadd.f32 %v1151, %v1196
        %v1198 = vpop.f32.mrb[0].mxu0
        %v1199 = vpop.f32.mrb[0].mxu0
        %v1200 = vpop.f32.mrb[0].mxu0
        %1201 = vdwg.mxu0
        %1202 = vrot.lane.b32.xlu0 %v884, 112
        %v1203 = vpop.permute.xlu0 %1202
        %1204 = vrot.lane.b32.xlu0 %v885, 112
        %v1205 = vpop.permute.xlu0 %1204
        %v1207 = vsel %vm887, %v1203, 0
        %v1210 = vsel %vm887, %v1205, 0
        %1212 = vmatprep.subr.bf16.mxu0 0
        %1213 = vmatpush1.bf16.xpose.msra.mxu0 %v1210
        %1214 = vmatprep.subr.bf16.mxu0 0
        %1215 = vmatpush1.bf16.xpose.msra.mxu0 0
        %1216 = vmatprep.subr.bf16.mxu0 0
        %1217 = vmatpush1.bf16.xpose.msra.mxu0 0
        %1218 = vmatprep.subr.bf16.mxu0 0
        %1219 = vmatpush1.bf16.xpose.msra.mxu0 0
        %1220 = vmatprep.subr.bf16.mxu0 0
        %1221 = vmatpush1.bf16.xpose.msra.mxu0 0
        %1222 = vmatprep.subr.bf16.mxu0 0
        %1223 = vmatpush1.bf16.xpose.msra.mxu0 0
        %1224 = vmatprep.subr.bf16.mxu0 0
        %1225 = vmatpush1.bf16.xpose.msra.mxu0 0
        %1226 = vmatprep.subr.bf16.mxu0 0
        %1227 = vmatpush1.bf16.xpose.msra.mxu0 0
        %1228 = vmatprep.subr.bf16.mxu0 0
        %1229 = vmatpush1.bf16.xpose.msra.mxu0 0
        %1230 = vmatprep.subr.bf16.mxu0 0
        %1231 = vmatpush1.bf16.xpose.msra.mxu0 0
        %1232 = vmatprep.subr.bf16.mxu0 0
        %1233 = vmatpush1.bf16.xpose.msra.mxu0 0
        %1234 = vmatprep.subr.bf16.mxu0 0
        %1235 = vmatpush1.bf16.xpose.msra.mxu0 0
        %1236 = vmatprep.subr.bf16.mxu0 0
        %1237 = vmatpush1.bf16.xpose.msra.mxu0 0
        %1238 = vmatprep.subr.bf16.mxu0 0
        %1239 = vmatpush1.bf16.xpose.msra.mxu0 0
        %1240 = vmatprep.subr.bf16.mxu0 0
        %1241 = vmatpush1.bf16.xpose.msra.mxu0 0
        %1242 = vmatprep.subr.bf16.mxu0 0
        %1243 = vmatpush1.bf16.xpose.msra.mxu0 0
        %1244 = vmatprep.mubr.bf16.mxu0 0
        %1245 = vmatmul.mubr.bf16.gmra.mrb[0].mxu0 %v1207
        %v1246 = vpop.f32.mrb[0].mxu0
        %v1247 = vadd.f32 0.0, %v1246
        %v1248 = vpop.f32.mrb[0].mxu0
        %v1249 = vpop.f32.mrb[0].mxu0
        %v1250 = vpop.f32.mrb[0].mxu0
        %1251 = vdwg.mxu0
        %v1252 = vsel %vm887, %v1247, -inf
        %1253 = vmax.xlane.f32.xlu0 %v1252
        %v1254 = vpop.xlane.xlu0 %1253
        %v1255 = vsub.f32 %v1247, %v1254
        %v1256 = vmul.f32 %v1255, 1.442695
        %v1257 = vpow.pop %v1256
        %v1258 = vsel %vm887, %v1257, 0.0
        %1259 = vadd.xlane.f32.xlu0 %v1258
        %v1260 = vpop.xlane.xlu0 %1259
        %v1261 = vrcp.pop %v1260
        %v1262 = vmul.f32 %v1257, %v1261
        %v1263 = vpack.c.bf16 %v1262, %v1262
        %1264 = vrot.lane.b32.xlu0 %v886, 112
        %v1265 = vpop.permute.xlu0 %1264
        %v1267 = vsel %vm887, %v1263, 0
        %v1270 = vsel %vm949, %v1265, 0
        %1272 = vmatprep.subr.bf16.mxu0 0
        %1273 = vmatpush1.bf16.msra.mxu0 %v1270
        %1274 = vmatprep.subr.bf16.mxu0 0
        %1275 = vmatpush1.bf16.msra.mxu0 0
        %1276 = vmatprep.subr.bf16.mxu0 0
        %1277 = vmatpush1.bf16.msra.mxu0 0
        %1278 = vmatprep.subr.bf16.mxu0 0
        %1279 = vmatpush1.bf16.msra.mxu0 0
        %1280 = vmatprep.subr.bf16.mxu0 0
        %1281 = vmatpush1.bf16.msra.mxu0 0
        %1282 = vmatprep.subr.bf16.mxu0 0
        %1283 = vmatpush1.bf16.msra.mxu0 0
        %1284 = vmatprep.subr.bf16.mxu0 0
        %1285 = vmatpush1.bf16.msra.mxu0 0
        %1286 = vmatprep.subr.bf16.mxu0 0
        %1287 = vmatpush1.bf16.msra.mxu0 0
        %1288 = vmatprep.subr.bf16.mxu0 0
        %1289 = vmatpush1.bf16.msra.mxu0 0
        %1290 = vmatprep.subr.bf16.mxu0 0
        %1291 = vmatpush1.bf16.msra.mxu0 0
        %1292 = vmatprep.subr.bf16.mxu0 0
        %1293 = vmatpush1.bf16.msra.mxu0 0
        %1294 = vmatprep.subr.bf16.mxu0 0
        %1295 = vmatpush1.bf16.msra.mxu0 0
        %1296 = vmatprep.subr.bf16.mxu0 0
        %1297 = vmatpush1.bf16.msra.mxu0 0
        %1298 = vmatprep.subr.bf16.mxu0 0
        %1299 = vmatpush1.bf16.msra.mxu0 0
        %1300 = vmatprep.subr.bf16.mxu0 0
        %1301 = vmatpush1.bf16.msra.mxu0 0
        %1302 = vmatprep.subr.bf16.mxu0 0
        %1303 = vmatpush1.bf16.msra.mxu0 0
        %1304 = vmatprep.mubr.bf16.mxu0 0
        %1305 = vmatmul.mubr.bf16.gmra.mrb[0].mxu0 %v1267
        %v1306 = vpop.f32.mrb[0].mxu0
        %v1307 = vadd.f32 0.0, %v1306
        %v1308 = vpop.f32.mrb[0].mxu0
        %v1309 = vpop.f32.mrb[0].mxu0
        %v1310 = vpop.f32.mrb[0].mxu0
        %1311 = vdwg.mxu0
        %v1312 = vpack.c.bf16 %v1307, %v1307
        %v1313 = vld [vmem:[#allocation8 + $0x8] sm:$0xf]
        %v1315 = vsel %vm887, %v1312, 0
        %v1318 = vsel %vm949, %v1313, 0
        %1320 = vmatprep.subr.bf16.mxu0 0
        %1321 = vmatpush1.bf16.msra.mxu0 %v1318
        %1322 = vmatprep.subr.bf16.mxu0 0
        %1323 = vmatpush1.bf16.msra.mxu0 0
        %1324 = vmatprep.subr.bf16.mxu0 0
        %1325 = vmatpush1.bf16.msra.mxu0 0
        %1326 = vmatprep.subr.bf16.mxu0 0
        %1327 = vmatpush1.bf16.msra.mxu0 0
        %1328 = vmatprep.subr.bf16.mxu0 0
        %1329 = vmatpush1.bf16.msra.mxu0 0
        %1330 = vmatprep.subr.bf16.mxu0 0
        %1331 = vmatpush1.bf16.msra.mxu0 0
        %1332 = vmatprep.subr.bf16.mxu0 0
        %1333 = vmatpush1.bf16.msra.mxu0 0
        %1334 = vmatprep.subr.bf16.mxu0 0
        %1335 = vmatpush1.bf16.msra.mxu0 0
        %1336 = vmatprep.subr.bf16.mxu0 0
        %1337 = vmatpush1.bf16.msra.mxu0 0
        %1338 = vmatprep.subr.bf16.mxu0 0
        %1339 = vmatpush1.bf16.msra.mxu0 0
        %1340 = vmatprep.subr.bf16.mxu0 0
        %1341 = vmatpush1.bf16.msra.mxu0 0
        %1342 = vmatprep.subr.bf16.mxu0 0
        %1343 = vmatpush1.bf16.msra.mxu0 0
        %1344 = vmatprep.subr.bf16.mxu0 0
        %1345 = vmatpush1.bf16.msra.mxu0 0
        %1346 = vmatprep.subr.bf16.mxu0 0
        %1347 = vmatpush1.bf16.msra.mxu0 0
        %1348 = vmatprep.subr.bf16.mxu0 0
        %1349 = vmatpush1.bf16.msra.mxu0 0
        %1350 = vmatprep.subr.bf16.mxu0 0
        %1351 = vmatpush1.bf16.msra.mxu0 0
        %1352 = vmatprep.mubr.bf16.mxu0 0
        %1353 = vmatmul.mubr.bf16.gmra.mrb[0].mxu0 %v1315
        %v1354 = vpop.f32.mrb[0].mxu0
        %v1355 = vadd.f32 0.0, %v1354
        %v1356 = vpop.f32.mrb[0].mxu0
        %v1357 = vpop.f32.mrb[0].mxu0
        %v1358 = vpop.f32.mrb[0].mxu0
        %1359 = vdwg.mxu0
        %v1360 = vadd.f32 %v1197, %v1355
        %1361 = vrot.lane.b32.xlu0 %v884, 104
        %v1362 = vpop.permute.xlu0 %1361
        %1363 = vrot.lane.b32.xlu0 %v885, 104
        %v1364 = vpop.permute.xlu0 %1363
        %v1366 = vsel %vm887, %v1362, 0
        %v1369 = vsel %vm887, %v1364, 0
        %1371 = vmatprep.subr.bf16.mxu0 0
        %1372 = vmatpush1.bf16.xpose.msra.mxu0 %v1369
        %1373 = vmatprep.subr.bf16.mxu0 0
        %1374 = vmatpush1.bf16.xpose.msra.mxu0 0
        %1375 = vmatprep.subr.bf16.mxu0 0
        %1376 = vmatpush1.bf16.xpose.msra.mxu0 0
        %1377 = vmatprep.subr.bf16.mxu0 0
        %1378 = vmatpush1.bf16.xpose.msra.mxu0 0
        %1379 = vmatprep.subr.bf16.mxu0 0
        %1380 = vmatpush1.bf16.xpose.msra.mxu0 0
        %1381 = vmatprep.subr.bf16.mxu0 0
        %1382 = vmatpush1.bf16.xpose.msra.mxu0 0
        %1383 = vmatprep.subr.bf16.mxu0 0
        %1384 = vmatpush1.bf16.xpose.msra.mxu0 0
        %1385 = vmatprep.subr.bf16.mxu0 0
        %1386 = vmatpush1.bf16.xpose.msra.mxu0 0
        %1387 = vmatprep.subr.bf16.mxu0 0
        %1388 = vmatpush1.bf16.xpose.msra.mxu0 0
        %1389 = vmatprep.subr.bf16.mxu0 0
        %1390 = vmatpush1.bf16.xpose.msra.mxu0 0
        %1391 = vmatprep.subr.bf16.mxu0 0
        %1392 = vmatpush1.bf16.xpose.msra.mxu0 0
        %1393 = vmatprep.subr.bf16.mxu0 0
        %1394 = vmatpush1.bf16.xpose.msra.mxu0 0
        %1395 = vmatprep.subr.bf16.mxu0 0
        %1396 = vmatpush1.bf16.xpose.msra.mxu0 0
        %1397 = vmatprep.subr.bf16.mxu0 0
        %1398 = vmatpush1.bf16.xpose.msra.mxu0 0
        %1399 = vmatprep.subr.bf16.mxu0 0
        %1400 = vmatpush1.bf16.xpose.msra.mxu0 0
        %1401 = vmatprep.subr.bf16.mxu0 0
        %1402 = vmatpush1.bf16.xpose.msra.mxu0 0
        %1403 = vmatprep.mubr.bf16.mxu0 0
        %1404 = vmatmul.mubr.bf16.gmra.mrb[0].mxu0 %v1366
        %v1405 = vpop.f32.mrb[0].mxu0
        %v1406 = vadd.f32 0.0, %v1405
        %v1407 = vpop.f32.mrb[0].mxu0
        %v1408 = vpop.f32.mrb[0].mxu0
        %v1409 = vpop.f32.mrb[0].mxu0
        %1410 = vdwg.mxu0
        %v1411 = vsel %vm887, %v1406, -inf
        %1412 = vmax.xlane.f32.xlu0 %v1411
        %v1413 = vpop.xlane.xlu0 %1412
        %v1414 = vsub.f32 %v1406, %v1413
        %v1415 = vmul.f32 %v1414, 1.442695
        %v1416 = vpow.pop %v1415
        %v1417 = vsel %vm887, %v1416, 0.0
        %1418 = vadd.xlane.f32.xlu0 %v1417
        %v1419 = vpop.xlane.xlu0 %1418
        %v1420 = vrcp.pop %v1419
        %v1421 = vmul.f32 %v1416, %v1420
        %v1422 = vpack.c.bf16 %v1421, %v1421
        %1423 = vrot.lane.b32.xlu0 %v886, 104
        %v1424 = vpop.permute.xlu0 %1423
        %v1426 = vsel %vm887, %v1422, 0
        %v1429 = vsel %vm949, %v1424, 0
        %1431 = vmatprep.subr.bf16.mxu0 0
        %1432 = vmatpush1.bf16.msra.mxu0 %v1429
        %1433 = vmatprep.subr.bf16.mxu0 0
        %1434 = vmatpush1.bf16.msra.mxu0 0
        %1435 = vmatprep.subr.bf16.mxu0 0
        %1436 = vmatpush1.bf16.msra.mxu0 0
        %1437 = vmatprep.subr.bf16.mxu0 0
        %1438 = vmatpush1.bf16.msra.mxu0 0
        %1439 = vmatprep.subr.bf16.mxu0 0
        %1440 = vmatpush1.bf16.msra.mxu0 0
        %1441 = vmatprep.subr.bf16.mxu0 0
        %1442 = vmatpush1.bf16.msra.mxu0 0
        %1443 = vmatprep.subr.bf16.mxu0 0
        %1444 = vmatpush1.bf16.msra.mxu0 0
        %1445 = vmatprep.subr.bf16.mxu0 0
        %1446 = vmatpush1.bf16.msra.mxu0 0
        %1447 = vmatprep.subr.bf16.mxu0 0
        %1448 = vmatpush1.bf16.msra.mxu0 0
        %1449 = vmatprep.subr.bf16.mxu0 0
        %1450 = vmatpush1.bf16.msra.mxu0 0
        %1451 = vmatprep.subr.bf16.mxu0 0
        %1452 = vmatpush1.bf16.msra.mxu0 0
        %1453 = vmatprep.subr.bf16.mxu0 0
        %1454 = vmatpush1.bf16.msra.mxu0 0
        %1455 = vmatprep.subr.bf16.mxu0 0
        %1456 = vmatpush1.bf16.msra.mxu0 0
        %1457 = vmatprep.subr.bf16.mxu0 0
        %1458 = vmatpush1.bf16.msra.mxu0 0
        %1459 = vmatprep.subr.bf16.mxu0 0
        %1460 = vmatpush1.bf16.msra.mxu0 0
        %1461 = vmatprep.subr.bf16.mxu0 0
        %1462 = vmatpush1.bf16.msra.mxu0 0
        %1463 = vmatprep.mubr.bf16.mxu0 0
        %1464 = vmatmul.mubr.bf16.gmra.mrb[0].mxu0 %v1426
        %v1465 = vpop.f32.mrb[0].mxu0
        %v1466 = vadd.f32 0.0, %v1465
        %v1467 = vpop.f32.mrb[0].mxu0
        %v1468 = vpop.f32.mrb[0].mxu0
        %v1469 = vpop.f32.mrb[0].mxu0
        %1470 = vdwg.mxu0
        %v1471 = vpack.c.bf16 %v1466, %v1466
        %v1472 = vld [vmem:[#allocation8 + $0xc] sm:$0xf]
        %v1474 = vsel %vm887, %v1471, 0
        %v1477 = vsel %vm949, %v1472, 0
        %1479 = vmatprep.subr.bf16.mxu0 0
        %1480 = vmatpush1.bf16.msra.mxu0 %v1477
        %1481 = vmatprep.subr.bf16.mxu0 0
        %1482 = vmatpush1.bf16.msra.mxu0 0
        %1483 = vmatprep.subr.bf16.mxu0 0
        %1484 = vmatpush1.bf16.msra.mxu0 0
        %1485 = vmatprep.subr.bf16.mxu0 0
        %1486 = vmatpush1.bf16.msra.mxu0 0
        %1487 = vmatprep.subr.bf16.mxu0 0
        %1488 = vmatpush1.bf16.msra.mxu0 0
        %1489 = vmatprep.subr.bf16.mxu0 0
        %1490 = vmatpush1.bf16.msra.mxu0 0
        %1491 = vmatprep.subr.bf16.mxu0 0
        %1492 = vmatpush1.bf16.msra.mxu0 0
        %1493 = vmatprep.subr.bf16.mxu0 0
        %1494 = vmatpush1.bf16.msra.mxu0 0
        %1495 = vmatprep.subr.bf16.mxu0 0
        %1496 = vmatpush1.bf16.msra.mxu0 0
        %1497 = vmatprep.subr.bf16.mxu0 0
        %1498 = vmatpush1.bf16.msra.mxu0 0
        %1499 = vmatprep.subr.bf16.mxu0 0
        %1500 = vmatpush1.bf16.msra.mxu0 0
        %1501 = vmatprep.subr.bf16.mxu0 0
        %1502 = vmatpush1.bf16.msra.mxu0 0
        %1503 = vmatprep.subr.bf16.mxu0 0
        %1504 = vmatpush1.bf16.msra.mxu0 0
        %1505 = vmatprep.subr.bf16.mxu0 0
        %1506 = vmatpush1.bf16.msra.mxu0 0
        %1507 = vmatprep.subr.bf16.mxu0 0
        %1508 = vmatpush1.bf16.msra.mxu0 0
        %1509 = vmatprep.subr.bf16.mxu0 0
        %1510 = vmatpush1.bf16.msra.mxu0 0
        %1511 = vmatprep.mubr.bf16.mxu0 0
        %1512 = vmatmul.mubr.bf16.gmra.mrb[0].mxu0 %v1474
        %v1513 = vpop.f32.mrb[0].mxu0
        %v1514 = vadd.f32 0.0, %v1513
        %v1515 = vpop.f32.mrb[0].mxu0
        %v1516 = vpop.f32.mrb[0].mxu0
        %v1517 = vpop.f32.mrb[0].mxu0
        %1518 = vdwg.mxu0
        %v1519 = vadd.f32 %v1360, %v1514
        %v1520 = vld [vmem:[#allocation10] sm:$0x1]
        %v1522 = vlaneseq
        %v1523 = vshrl.u32 %v1522, 7
        %v1524 = vsub.s32 0, %v1523
        %v1525 = vrot.slane %v1520, %v1524
        %v1527 = vadd.f32 %v1519, %v1525
        %v1528 = vadd.f32 %v683, %v1527
        %v1529 = vld [vmem:[%s14] sm:$0x1]
        %v1530 = vld [vmem:[%s15] sm:$0x1]
        %v1531 = vsel %vm710, %v1528, 0.0
        %1532 = vadd.xlane.f32.xlu0 %v1531
        %v1533 = vpop.xlane.xlu0 %1532
        %v1534 = vrcp.pop 32.0
        %v1535 = vmul.f32 %v1533, %v1534
        %v1536 = vsub.f32 %v1528, %v1535
        %v1537 = vmul.f32 %v1536, %v1536
        %v1538 = vsel %vm710, %v1537, 0.0
        %1539 = vadd.xlane.f32.xlu0 %v1538
        %v1540 = vpop.xlane.xlu0 %1539
        %v1541 = vmul.f32 %v1540, %v1534
        %v1542 = vadd.f32 %v1541, 1e-05
        %v1543 = vrsqrt.pop %v1542
        %v1544 = vmul.f32 %v1536, %v1543
        %v1546 = vlaneseq
        %v1547 = vshrl.u32 %v1546, 7
        %v1548 = vsub.s32 0, %v1547
        %v1549 = vrot.slane %v1529, %v1548
        %v1551 = vmul.f32 %v1544, %v1549
        %v1553 = vlaneseq
        %v1554 = vshrl.u32 %v1553, 7
        %v1555 = vsub.s32 0, %v1554
        %v1556 = vrot.slane %v1530, %v1555
        %v1558 = vadd.f32 %v1551, %v1556
        %v1559 = vpack.c.bf16 %v1558, %v1558
        %v1560 = vld [vmem:[%s10] sm:$0xf]
        %v1561 = vld [vmem:[%s10 + $0x4] sm:$0xf]
        %v1562 = vld [vmem:[%s10 + $0x8] sm:$0xf]
        %v1563 = vld [vmem:[%s10 + $0xc] sm:$0xf]
        %v1564 = vld [vmem:[%s11] sm:$0x1]
        %v1566 = vlaneseq
        %v1567 = vshrl.u32 %v1566, 7
        %v1568 = vsub.s32 0, %v1567
        %v1569 = vrot.slane %v1564, %v1568
        %v1575 = vunpack.c.l.b16 %v1560
        %v1576 = vunpack.c.l.b16 %v1561
        %v1577 = vunpack.c.l.b16 %v1562
        %v1578 = vunpack.c.l.b16 %v1563
        %v1579 = vpack.c.b16 %v1576, %v1575
        %v1580 = vpack.c.b16 %v1578, %v1577
        %v1584 = vsel %vm710, %v1559, 0
        %1586 = vmatprep.subr.bf16.mxu0 0
        %1587 = vmatpush1.bf16.msra.mxu0 %v1579
        %1588 = vmatprep.subr.bf16.mxu0 0
        %1589 = vmatpush1.bf16.msra.mxu0 %v1580
        %1590 = vmatprep.subr.bf16.mxu0 0
        %1591 = vmatpush1.bf16.msra.mxu0 0
        %1592 = vmatprep.subr.bf16.mxu0 0
        %1593 = vmatpush1.bf16.msra.mxu0 0
        %1594 = vmatprep.subr.bf16.mxu0 0
        %1595 = vmatpush1.bf16.msra.mxu0 0
        %1596 = vmatprep.subr.bf16.mxu0 0
        %1597 = vmatpush1.bf16.msra.mxu0 0
        %1598 = vmatprep.subr.bf16.mxu0 0
        %1599 = vmatpush1.bf16.msra.mxu0 0
        %1600 = vmatprep.subr.bf16.mxu0 0
        %1601 = vmatpush1.bf16.msra.mxu0 0
        %1602 = vmatprep.subr.bf16.mxu0 0
        %1603 = vmatpush1.bf16.msra.mxu0 0
        %1604 = vmatprep.subr.bf16.mxu0 0
        %1605 = vmatpush1.bf16.msra.mxu0 0
        %1606 = vmatprep.subr.bf16.mxu0 0
        %1607 = vmatpush1.bf16.msra.mxu0 0
        %1608 = vmatprep.subr.bf16.mxu0 0
        %1609 = vmatpush1.bf16.msra.mxu0 0
        %1610 = vmatprep.subr.bf16.mxu0 0
        %1611 = vmatpush1.bf16.msra.mxu0 0
        %1612 = vmatprep.subr.bf16.mxu0 0
        %1613 = vmatpush1.bf16.msra.mxu0 0
        %1614 = vmatprep.subr.bf16.mxu0 0
        %1615 = vmatpush1.bf16.msra.mxu0 0
        %1616 = vmatprep.subr.bf16.mxu0 0
        %1617 = vmatpush1.bf16.msra.mxu0 0
        %1618 = vmatprep.mubr.bf16.mxu0 0
        %1619 = vmatmul.mubr.bf16.gmra.mrb[0].mxu0 %v1584
        %v1620 = vpop.f32.mrb[0].mxu0
        %v1621 = vadd.f32 %v1569, %v1620
        %v1622 = vpop.f32.mrb[0].mxu0
        %v1623 = vpop.f32.mrb[0].mxu0
        %v1624 = vpop.f32.mrb[0].mxu0
        %1625 = vdwg.mxu0
        %v1626 = vmax.f32 %v1621, 0.0
        %v1627 = vpack.c.bf16 %v1626, %v1626
        %v1628 = vld [vmem:[%s12] sm:$0xf]
        %v1629 = vld [vmem:[%s12 + $0x4] sm:$0xf]
        %v1630 = vld [vmem:[%s12 + $0x8] sm:$0xf]
        %v1631 = vld [vmem:[%s12 + $0xc] sm:$0xf]
        %v1632 = vld [vmem:[%s12 + $0x10] sm:$0xf]
        %v1633 = vld [vmem:[%s12 + $0x14] sm:$0xf]
        %v1634 = vld [vmem:[%s12 + $0x18] sm:$0xf]
        %v1635 = vld [vmem:[%s12 + $0x1c] sm:$0xf]
        %v1636 = vld [vmem:[%s13] sm:$0x1]
        %v1638 = vlaneseq
        %v1639 = vshrl.u32 %v1638, 7
        %v1640 = vsub.s32 0, %v1639
        %v1641 = vrot.slane %v1636, %v1640
        %v1651 = vunpack.c.l.b16 %v1628
        %v1652 = vunpack.c.l.b16 %v1629
        %v1653 = vunpack.c.l.b16 %v1630
        %v1654 = vunpack.c.l.b16 %v1631
        %v1655 = vunpack.c.l.b16 %v1632
        %v1656 = vunpack.c.l.b16 %v1633
        %v1657 = vunpack.c.l.b16 %v1634
        %v1658 = vunpack.c.l.b16 %v1635
        %v1659 = vpack.c.b16 %v1652, %v1651
        %v1660 = vpack.c.b16 %v1654, %v1653
        %v1661 = vpack.c.b16 %v1656, %v1655
        %v1662 = vpack.c.b16 %v1658, %v1657
        %vm1667 = vcmask 523264
        %v1669 = vsel %vm1667, %v1627, 0
        %1671 = vmatprep.subr.bf16.mxu0 0
        %1672 = vmatpush1.bf16.msra.mxu0 %v1659
        %1673 = vmatprep.subr.bf16.mxu0 0
        %1674 = vmatpush1.bf16.msra.mxu0 %v1660
        %1675 = vmatprep.subr.bf16.mxu0 0
        %1676 = vmatpush1.bf16.msra.mxu0 %v1661
        %1677 = vmatprep.subr.bf16.mxu0 0
        %1678 = vmatpush1.bf16.msra.mxu0 %v1662
        %1679 = vmatprep.subr.bf16.mxu0 0
        %1680 = vmatpush1.bf16.msra.mxu0 0
        %1681 = vmatprep.subr.bf16.mxu0 0
        %1682 = vmatpush1.bf16.msra.mxu0 0
        %1683 = vmatprep.subr.bf16.mxu0 0
        %1684 = vmatpush1.bf16.msra.mxu0 0
        %1685 = vmatprep.subr.bf16.mxu0 0
        %1686 = vmatpush1.bf16.msra.mxu0 0
        %1687 = vmatprep.subr.bf16.mxu0 0
        %1688 = vmatpush1.bf16.msra.mxu0 0
        %1689 = vmatprep.subr.bf16.mxu0 0
        %1690 = vmatpush1.bf16.msra.mxu0 0
        %1691 = vmatprep.subr.bf16.mxu0 0
        %1692 = vmatpush1.bf16.msra.mxu0 0
        %1693 = vmatprep.subr.bf16.mxu0 0
        %1694 = vmatpush1.bf16.msra.mxu0 0
        %1695 = vmatprep.subr.bf16.mxu0 0
        %1696 = vmatpush1.bf16.msra.mxu0 0
        %1697 = vmatprep.subr.bf16.mxu0 0
        %1698 = vmatpush1.bf16.msra.mxu0 0
        %1699 = vmatprep.subr.bf16.mxu0 0
        %1700 = vmatpush1.bf16.msra.mxu0 0
        %1701 = vmatprep.subr.bf16.mxu0 0
        %1702 = vmatpush1.bf16.msra.mxu0 0
        %1703 = vmatprep.mubr.bf16.mxu0 0
        %1704 = vmatmul.mubr.bf16.gmra.mrb[0].mxu0 %v1669
        %v1705 = vpop.f32.mrb[0].mxu0
        %v1706 = vadd.f32 %v1641, %v1705
        %v1707 = vpop.f32.mrb[0].mxu0
        %v1708 = vpop.f32.mrb[0].mxu0
        %v1709 = vpop.f32.mrb[0].mxu0
        %1710 = vdwg.mxu0
        %v1711 = vadd.f32 %v1558, %v1706
        %v1712 = vld [vmem:[%s16] sm:$0x1]
        %v1713 = vld [vmem:[%s17] sm:$0x1]
        %v1714 = vsel %vm710, %v1711, 0.0
        %1715 = vadd.xlane.f32.xlu0 %v1714
        %v1716 = vpop.xlane.xlu0 %1715
        %v1717 = vmul.f32 %v1716, %v1534
        %v1718 = vsub.f32 %v1711, %v1717
        %v1719 = vmul.f32 %v1718, %v1718
        %v1720 = vsel %vm710, %v1719, 0.0
        %1721 = vadd.xlane.f32.xlu0 %v1720
        %v1722 = vpop.xlane.xlu0 %1721
        %v1723 = vmul.f32 %v1722, %v1534
        %v1724 = vadd.f32 %v1723, 1e-05
        %v1725 = vrsqrt.pop %v1724
        %v1726 = vmul.f32 %v1718, %v1725
        %v1728 = vlaneseq
        %v1729 = vshrl.u32 %v1728, 7
        %v1730 = vsub.s32 0, %v1729
        %v1731 = vrot.slane %v1712, %v1730
        %v1733 = vmul.f32 %v1726, %v1731
        %v1735 = vlaneseq
        %v1736 = vshrl.u32 %v1735, 7
        %v1737 = vsub.s32 0, %v1736
        %v1738 = vrot.slane %v1713, %v1737
        %v1740 = vadd.f32 %v1733, %v1738
        %1741 = vst.msk [vmem:[%s670] sm:$0xff] %vm710, %v1740
        %s1742 = sand.u32 %s447, 1
        %s1743 = scalar_lea.sflag [#allocation4], %s1742
        %s1744 = sand.u32 %s447, 1
        %s1745 = smul.addr %s1744, 8
        %s1746 = scalar_lea.vmem [#allocation11], %s1745
        // Predicated region
        $region113: #{tpu_custom_call.1} parent=91 // pred_check
          %p1747 = pneg %p457
        $region114: #{tpu_custom_call.1} parent=91 // pred_check_branch
          %1749 = sbr.rel (%p1747) target = $region116
        $region115: #{tpu_custom_call.1} parent=91 // pred_region
          %s1751 = ssub.s32 128, 128
          %1752 = vsyncadd %s1743, %s1751
          %s1753 = sadd.s32 %s40, %s39
          %s1754 = smul.addr %s1753, 128
          %s1755 = scalar_lea.hbm %s18, %s1754
          %s1757 = sshll.u32 %s1746, 4
          %s1758 = int_to_ptr.vmem [resolvable:$true] %s1757
          %1760 = dma.vmem_to_hbm [thread:$0]  %s1758, 128, %s1755, %s1743
        $region116: #{tpu_custom_call.1} parent=91 // pred_fallthru
          _
      $region92: #{tpu_custom_call.1} parent=5 // pred_fallthru
        _
      %p1761 = scmp.le.s32.totalorder 2, %s30
      // Predicated region
      $region117: #{tpu_custom_call.1} parent=5 // pred_check
        %p1762 = pneg %p1761
      $region118: #{tpu_custom_call.1} parent=5 // pred_check_branch
        %1764 = sbr.rel (%p1762) target = $region120
      $region119: #{tpu_custom_call.1} parent=5 // pred_region
        %s1765 = ssub.s32 %s30, 2
        // Predicated region
        $region121: #{tpu_custom_call.1} parent=119 // pred_check
          %p1766 = pneg %p463
        $region122: #{tpu_custom_call.1} parent=119 // pred_check_branch
          %1768 = sbr.rel (%p1766) target = $region124
        $region123: #{tpu_custom_call.1} parent=119 // pred_region
          %s1769 = sand.u32 %s448, 1
          %s1770 = scalar_lea.sflag [#allocation4], %s1769
          %s1771 = sand.u32 %s448, 1
          %s1772 = smul.addr %s1771, 8
          %s1773 = scalar_lea.vmem [#allocation11], %s1772
          %1774 = dma.done %s1770, 128
        $region124: #{tpu_custom_call.1} parent=119 // pred_fallthru
          _
      $region120: #{tpu_custom_call.1} parent=5 // pred_fallthru
        _
    $region6: #{tpu_custom_call.1} parent=1 // loop_footer
      %s34 = sadd.s32 1, %s30
    $region7: #{tpu_custom_call.1} parent=1 // loop_footer_branch
      %29 = sbr.rel target = $region3
    $region8: #{tpu_custom_call.1} parent=1 // loop_exit
      _
    %1775 = vsyncpa [#allocation3], 1
    %s1776 = scalar_lea.sflag [#allocation3], 1
    %1777 = vsyncpa %s1776, 1
    %1778 = vsyncpa [#allocation6], 1
    %1779 = vsyncpa [#allocation9], 1
    %1780 = vsyncpa [#allocation4], 1
    %s1781 = scalar_lea.sflag [#allocation4], 1
    %1782 = vsyncpa %s1781, 1

</llo_original>
